<compile_context>
chip_gen: v7x
topology: tpu7x:2x2x1
jax: 0.10.0
libtpu: 0.0.40
codegen_flags: <defaults>
</compile_context>

<pallas_src>
import math
from functools import partial

import jax
import jax.numpy as jnp
from jax.experimental import pallas as pl
from jax.experimental.pallas import tpu as pltpu

_BN_EPS = 1e-5  # PyTorch BatchNorm2d default


# ---------------------------------------------------------------------------
# Kernels
# ---------------------------------------------------------------------------

def _linear(x, w, b):
    """(rows, C_in) @ (C_in, C_out) + (1, C_out) with f32 accumulation."""
    if w.shape[0] == 1:
        # Single input channel (first GMAN layer): a broadcasted multiply is
        # cheaper and more robust than a K=1 MXU push.
        return x * w + b
    return jnp.dot(x, w, preferred_element_type=jnp.float32) + b


def _act(y, act):
    if act == "relu":
        return jnp.maximum(y, 0.0)
    return y


def _row_mask(y, tile_idx, n_valid):
    """Zero rows past n_valid (only emitted when the row axis was padded)."""
    tile_r = y.shape[0]
    row = tile_idx * tile_r + jax.lax.broadcasted_iota(jnp.int32, (tile_r, 1), 0)
    return jnp.where(row < n_valid, y, 0.0)


def _stats_kernel(x_ref, w_ref, b_ref, stat_ref, *, n_valid):
    """Accumulate per-channel [sum; sum_sq] of (x @ w + b) across the row grid."""
    i = pl.program_id(0)

    @pl.when(i == 0)
    def _():
        stat_ref[...] = jnp.zeros_like(stat_ref)

    y = _linear(x_ref[...], w_ref[...], b_ref[...])
    if n_valid % x_ref.shape[0] != 0:  # static: mask only when rows were padded
        y = _row_mask(y, i, n_valid)
    stat_ref[...] += jnp.concatenate(
        [jnp.sum(y, axis=0, keepdims=True),
         jnp.sum(y * y, axis=0, keepdims=True)], axis=0)


def _apply_kernel(x_ref, w_ref, b_ref, y_ref, *, act):
    """y = act(x @ w_eff + b_eff); BN already folded into (w_eff, b_eff)."""
    y_ref[...] = _act(_linear(x_ref[...], w_ref[...], b_ref[...]), act).astype(y_ref.dtype)


def _apply_stats_kernel(x_ref, w_ref, b_ref, w2_ref, b2_ref, y_ref, stat_ref,
                        *, act, n_valid):
    """Fused: apply layer l (BN folded) AND accumulate BN stats for layer l+1.

    Saves one full HBM read of the intermediate activations per middle layer.
    """
    i = pl.program_id(0)

    @pl.when(i == 0)
    def _():
        stat_ref[...] = jnp.zeros_like(stat_ref)

    y = _act(_linear(x_ref[...], w_ref[...], b_ref[...]), act)
    y_ref[...] = y.astype(y_ref.dtype)

    y2 = _linear(y, w2_ref[...], b2_ref[...])
    if n_valid % x_ref.shape[0] != 0:
        y2 = _row_mask(y2, i, n_valid)
    stat_ref[...] += jnp.concatenate(
        [jnp.sum(y2, axis=0, keepdims=True),
         jnp.sum(y2 * y2, axis=0, keepdims=True)], axis=0)


# ---------------------------------------------------------------------------
# pallas_call wrappers
# ---------------------------------------------------------------------------

def _row_spec(tile_r, c):
    return pl.BlockSpec((tile_r, c), lambda i: (i, 0))


def _full_spec(shape):
    return pl.BlockSpec(shape, lambda i, _s=len(shape): (0,) * _s)


def _stats_call(x, w, b, *, grid, tile_r, n_valid):
    c_in, c_out = w.shape
    return pl.pallas_call(
        partial(_stats_kernel, n_valid=n_valid),
        out_shape=jax.ShapeDtypeStruct((2, c_out), jnp.float32),
        grid=grid,
        in_specs=[_row_spec(tile_r, c_in), _full_spec(w.shape), _full_spec(b.shape)],
        out_specs=_full_spec((2, c_out)),
        compiler_params=pltpu.CompilerParams(dimension_semantics=("arbitrary",)),
    )(x, w, b)


def _apply_call(x, w, b, *, act, grid, tile_r):
    rp = x.shape[0]
    c_in, c_out = w.shape
    return pl.pallas_call(
        partial(_apply_kernel, act=act),
        out_shape=jax.ShapeDtypeStruct((rp, c_out), jnp.float32),
        grid=grid,
        in_specs=[_row_spec(tile_r, c_in), _full_spec(w.shape), _full_spec(b.shape)],
        out_specs=_row_spec(tile_r, c_out),
        compiler_params=pltpu.CompilerParams(dimension_semantics=("parallel",)),
    )(x, w, b)


def _apply_stats_call(x, w, b, w2, b2, *, act, grid, tile_r, n_valid):
    rp = x.shape[0]
    c_in, c_out = w.shape
    c_out2 = w2.shape[1]
    return pl.pallas_call(
        partial(_apply_stats_kernel, act=act, n_valid=n_valid),
        out_shape=(jax.ShapeDtypeStruct((rp, c_out), jnp.float32),
                   jax.ShapeDtypeStruct((2, c_out2), jnp.float32)),
        grid=grid,
        in_specs=[_row_spec(tile_r, c_in), _full_spec(w.shape), _full_spec(b.shape),
                  _full_spec(w2.shape), _full_spec(b2.shape)],
        out_specs=(_row_spec(tile_r, c_out), _full_spec((2, c_out2))),
        compiler_params=pltpu.CompilerParams(dimension_semantics=("arbitrary",)),
    )(x, w, b, w2, b2)


# ---------------------------------------------------------------------------
# Forward pass
# ---------------------------------------------------------------------------

def _fold_bn(w, b, stats, gamma, beta, n_rows):
    """Fold training-mode BatchNorm (batch statistics) into the layer weights."""
    mean = stats[0] / n_rows
    var = jnp.maximum(stats[1] / n_rows - mean * mean, 0.0)  # biased variance
    scale = gamma * jax.lax.rsqrt(var + _BN_EPS)
    w_eff = w * scale[None, :]
    b_eff = (b - mean[None, :]) * scale[None, :] + beta[None, :]
    return w_eff, b_eff


@partial(jax.jit, static_argnames=("acts", "tile_r"))
def fully_connected(x, params, acts, *, tile_r=512):
    """FullyConnected.forward: chain of (1x1 conv -> BatchNorm -> activation).

    x: (B, T, N, C0).  params: tuple of dicts with 'w' (C_in, C_out), 'b' (1, C_out),
    'gamma'/'beta' (C_out,).  acts: static tuple of {"relu", None} per layer.
    """
    assert len(params) == len(acts) >= 1
    B, T, N, c0 = x.shape
    n_rows = B * T * N
    n_tiles = (n_rows + tile_r - 1) // tile_r
    rp = n_tiles * tile_r
    grid = (n_tiles,)

    h = x.reshape(n_rows, c0).astype(jnp.float32)
    if rp != n_rows:
        h = jnp.pad(h, ((0, rp - n_rows), (0, 0)))

    # BN statistics of layer 0's pre-normalization activations (tiled reduction).
    stats = _stats_call(h, params[0]["w"], params[0]["b"],
                        grid=grid, tile_r=tile_r, n_valid=n_rows)
    w_eff, b_eff = _fold_bn(params[0]["w"], params[0]["b"], stats,
                            params[0]["gamma"], params[0]["beta"], n_rows)

    # Middle layers: fused "apply layer l + stats for layer l+1".
    for l in range(len(params) - 1):
        nxt = params[l + 1]
        h, stats = _apply_stats_call(h, w_eff, b_eff, nxt["w"], nxt["b"],
                                     act=acts[l], grid=grid, tile_r=tile_r,
                                     n_valid=n_rows)
        w_eff, b_eff = _fold_bn(nxt["w"], nxt["b"], stats,
                                nxt["gamma"], nxt["beta"], n_rows)

    # Last layer: plain fused linear+BN+act, fully parallel over row tiles.
    y = _apply_call(h, w_eff, b_eff, act=acts[-1], grid=grid, tile_r=tile_r)
    return y[:n_rows].reshape(B, T, N, -1)


# ---------------------------------------------------------------------------
# Parameters & pure-JAX reference
# ---------------------------------------------------------------------------

def make_params(key, input_dims, units):
    """Mirror PyTorch init: xavier_uniform conv weight (stored pre-transposed as
    (C_in, C_out)), zero conv bias, BN gamma=1 / beta=0."""
    params = []
    for c_in, c_out in zip(input_dims, units):
        key, kw = jax.random.split(key)
        bound = math.sqrt(6.0 / (c_in + c_out))
        params.append(dict(
            w=jax.random.uniform(kw, (c_in, c_out), jnp.float32, -bound, bound),
            b=jnp.zeros((1, c_out), jnp.float32),
            gamma=jnp.ones((c_out,), jnp.float32),
            beta=jnp.zeros((c_out,), jnp.float32),
        ))
    return tuple(params)


def fully_connected_ref(x, params, acts):
    """Pure-JAX reference mirroring the PyTorch forward (BN in training mode)."""
    h = x.astype(jnp.float32)
    for p, act in zip(params, acts):
        y = jnp.einsum("btnc,cd->btnd", h, p["w"]) + p["b"][0]
        mean = jnp.mean(y, axis=(0, 1, 2))
        var = jnp.mean(jnp.square(y - mean), axis=(0, 1, 2))  # biased, as PyTorch BN
        y = (y - mean) * jax.lax.rsqrt(var + _BN_EPS) * p["gamma"] + p["beta"]
        if act == "relu":
            y = jnp.maximum(y, 0.0)
        h = y
    return h


if __name__ == "__main__":
    # FullyConnected(input_dims=[1, 128], units=[128, 128], activations=[relu, None])
    # applied to X of shape (batch=2, num_his=8, num_nodes=16, 1), matching the
    # module docstring's input layout.  C_out=128 keeps all stores lane-dense.
    B, T, N = 2, 8, 16
    input_dims = [1, 128]
    units = [128, 128]
    acts = ("relu", None)

    key = jax.random.PRNGKey(0)
    kx, kp = jax.random.split(key)
    x = jax.random.normal(kx, (B, T, N, input_dims[0]), jnp.float32)
    params = make_params(kp, input_dims, units)

    y = fully_connected(x, params, acts=acts, tile_r=128)  # 256 rows -> 2-step grid
    jax.block_until_ready(y)

    y_ref = fully_connected_ref(x, params, acts)
    assert y.shape == (B, T, N, units[-1])
    max_err = float(jnp.max(jnp.abs(y - y_ref)))
    assert jnp.allclose(y, y_ref, atol=1e-4, rtol=1e-4), (
        f"kernel mismatch vs JAX reference, max abs err {max_err}")
    print("KERNEL_OK")
</pallas_src>

<mosaic_0001>
module attributes {stable_mosaic.version = 11 : i64} {
  func.func @_stats_kernel(%arg0: i32, %arg1: memref<128x1xf32, #tpu.memory_space<vmem>>, %arg2: memref<1x128xf32, #tpu.memory_space<vmem>>, %arg3: memref<1x128xf32, #tpu.memory_space<vmem>>, %arg4: memref<2x128xf32, #tpu.memory_space<vmem>>) attributes {dimension_semantics = [#tpu.dimension_semantics<arbitrary>], iteration_bounds = array<i64: 2>, scalar_prefetch = 0 : i64, scratch_operands = 0 : i64, tpu.core_type = #tpu.core_type<tc>, window_params = [{transform_indices = @transform_0, window_bounds = array<i64: 128, 1>}, {pipeline_mode = #tpu.pipeline_mode<synchronous>, transform_indices = @transform_1, window_bounds = array<i64: 1, 128>}, {pipeline_mode = #tpu.pipeline_mode<synchronous>, transform_indices = @transform_2, window_bounds = array<i64: 1, 128>}, {pipeline_mode = #tpu.pipeline_mode<synchronous>, transform_indices = @transform_3, window_bounds = array<i64: 2, 128>}]} {
    %c0_i32 = arith.constant 0 : i32
    %0 = arith.cmpi eq, %arg0, %c0_i32 : i32
    %1 = arith.extui %0 : i1 to i32
    %c0_i32_0 = arith.constant 0 : i32
    %2 = arith.cmpi ne, %1, %c0_i32_0 : i32
    scf.if %2 {
      %cst_11 = arith.constant 0.000000e+00 : f32
      %20 = vector.broadcast %cst_11 : f32 to vector<2x128xf32>
      %c0_12 = arith.constant 0 : index
      %c0_13 = arith.constant 0 : index
      %21 = vector.load %arg4[%c0_12, %c0_13] : memref<2x128xf32, #tpu.memory_space<vmem>>, vector<2x128xf32>
      tpu.vector_store %arg4[%c0_12, %c0_13], %20 {strides = array<i32>} : memref<2x128xf32, #tpu.memory_space<vmem>>, vector<2x128xf32>,
    } else {
    }
    %c0 = arith.constant 0 : index
    %c0_1 = arith.constant 0 : index
    %3 = vector.load %arg1[%c0, %c0_1] : memref<128x1xf32, #tpu.memory_space<vmem>>, vector<128x1xf32>
    %c0_2 = arith.constant 0 : index
    %c0_3 = arith.constant 0 : index
    %4 = vector.load %arg2[%c0_2, %c0_3] : memref<1x128xf32, #tpu.memory_space<vmem>>, vector<1x128xf32>
    %c0_4 = arith.constant 0 : index
    %c0_5 = arith.constant 0 : index
    %5 = vector.load %arg3[%c0_4, %c0_5] : memref<1x128xf32, #tpu.memory_space<vmem>>, vector<1x128xf32>
    %6 = vector.broadcast %3 : vector<128x1xf32> to vector<128x128xf32>
    %7 = vector.broadcast %4 : vector<1x128xf32> to vector<128x128xf32>
    %8 = arith.mulf %6, %7 : vector<128x128xf32>
    %9 = vector.broadcast %5 : vector<1x128xf32> to vector<128x128xf32>
    %10 = arith.addf %8, %9 : vector<128x128xf32>
    %c0_6 = arith.constant 0 : index
    %c0_7 = arith.constant 0 : index
    %11 = vector.load %arg4[%c0_6, %c0_7] : memref<2x128xf32, #tpu.memory_space<vmem>>, vector<2x128xf32>
    %cst = arith.constant dense<0.000000e+00> : vector<128xf32>
    %12 = vector.multi_reduction <add>, %10, %cst [0] : vector<128x128xf32> to vector<128xf32>
    %13 = vector.shape_cast %12 : vector<128xf32> to vector<1x128xf32>
    %14 = arith.mulf %10, %10 : vector<128x128xf32>
    %cst_8 = arith.constant dense<0.000000e+00> : vector<128xf32>
    %15 = vector.multi_reduction <add>, %14, %cst_8 [0] : vector<128x128xf32> to vector<128xf32>
    %16 = vector.shape_cast %15 : vector<128xf32> to vector<1x128xf32>
    %17 = tpu.concatenate %13, %16 in 0 : vector<1x128xf32>, vector<1x128xf32> -> vector<2x128xf32>
    %18 = arith.addf %11, %17 : vector<2x128xf32>
    %c0_9 = arith.constant 0 : index
    %c0_10 = arith.constant 0 : index
    %19 = vector.load %arg4[%c0_9, %c0_10] : memref<2x128xf32, #tpu.memory_space<vmem>>, vector<2x128xf32>
    tpu.vector_store %arg4[%c0_9, %c0_10], %18 {strides = array<i32>} : memref<2x128xf32, #tpu.memory_space<vmem>>, vector<2x128xf32>,
    return
  }
  func.func @transform_0(%arg0: i32) -> (i32, i32) {
    %c0_i32 = arith.constant 0 : i32
    %c0_i32_0 = arith.constant 0 : i32
    return %arg0, %c0_i32 : i32, i32
  }
  func.func @transform_1(%arg0: i32) -> (i32, i32) {
    %c0_i32 = arith.constant 0 : i32
    %c0_i32_0 = arith.constant 0 : i32
    %c0_i32_1 = arith.constant 0 : i32
    return %c0_i32, %c0_i32_0 : i32, i32
  }
  func.func @transform_2(%arg0: i32) -> (i32, i32) {
    %c0_i32 = arith.constant 0 : i32
    %c0_i32_0 = arith.constant 0 : i32
    %c0_i32_1 = arith.constant 0 : i32
    return %c0_i32, %c0_i32_0 : i32, i32
  }
  func.func @transform_3(%arg0: i32) -> (i32, i32) {
    %c0_i32 = arith.constant 0 : i32
    %c0_i32_0 = arith.constant 0 : i32
    %c0_i32_1 = arith.constant 0 : i32
    return %c0_i32, %c0_i32_0 : i32, i32
  }
}

module attributes {stable_mosaic.version = 11 : i64} {
  func.func @_apply_stats_kernel(%arg0: i32, %arg1: memref<128x1xf32, #tpu.memory_space<vmem>>, %arg2: memref<1x128xf32, #tpu.memory_space<vmem>>, %arg3: memref<1x128xf32, #tpu.memory_space<vmem>>, %arg4: memref<128x128xf32, #tpu.memory_space<vmem>>, %arg5: memref<1x128xf32, #tpu.memory_space<vmem>>, %arg6: memref<128x128xf32, #tpu.memory_space<vmem>>, %arg7: memref<2x128xf32, #tpu.memory_space<vmem>>) attributes {dimension_semantics = [#tpu.dimension_semantics<arbitrary>], iteration_bounds = array<i64: 2>, scalar_prefetch = 0 : i64, scratch_operands = 0 : i64, tpu.core_type = #tpu.core_type<tc>, window_params = [{transform_indices = @transform_0, window_bounds = array<i64: 128, 1>}, {pipeline_mode = #tpu.pipeline_mode<synchronous>, transform_indices = @transform_1, window_bounds = array<i64: 1, 128>}, {pipeline_mode = #tpu.pipeline_mode<synchronous>, transform_indices = @transform_2, window_bounds = array<i64: 1, 128>}, {pipeline_mode = #tpu.pipeline_mode<synchronous>, transform_indices = @transform_3, window_bounds = array<i64: 128, 128>}, {pipeline_mode = #tpu.pipeline_mode<synchronous>, transform_indices = @transform_4, window_bounds = array<i64: 1, 128>}, {transform_indices = @transform_5, window_bounds = array<i64: 128, 128>}, {pipeline_mode = #tpu.pipeline_mode<synchronous>, transform_indices = @transform_6, window_bounds = array<i64: 2, 128>}]} {
    %c0_i32 = arith.constant 0 : i32
    %0 = arith.cmpi eq, %arg0, %c0_i32 : i32
    %1 = arith.extui %0 : i1 to i32
    %c0_i32_0 = arith.constant 0 : i32
    %2 = arith.cmpi ne, %1, %c0_i32_0 : i32
    scf.if %2 {
      %cst_19 = arith.constant 0.000000e+00 : f32
      %28 = vector.broadcast %cst_19 : f32 to vector<2x128xf32>
      %c0_20 = arith.constant 0 : index
      %c0_21 = arith.constant 0 : index
      %29 = vector.load %arg7[%c0_20, %c0_21] : memref<2x128xf32, #tpu.memory_space<vmem>>, vector<2x128xf32>
      tpu.vector_store %arg7[%c0_20, %c0_21], %28 {strides = array<i32>} : memref<2x128xf32, #tpu.memory_space<vmem>>, vector<2x128xf32>,
    } else {
    }
    %c0 = arith.constant 0 : index
    %c0_1 = arith.constant 0 : index
    %3 = vector.load %arg1[%c0, %c0_1] : memref<128x1xf32, #tpu.memory_space<vmem>>, vector<128x1xf32>
    %c0_2 = arith.constant 0 : index
    %c0_3 = arith.constant 0 : index
    %4 = vector.load %arg2[%c0_2, %c0_3] : memref<1x128xf32, #tpu.memory_space<vmem>>, vector<1x128xf32>
    %c0_4 = arith.constant 0 : index
    %c0_5 = arith.constant 0 : index
    %5 = vector.load %arg3[%c0_4, %c0_5] : memref<1x128xf32, #tpu.memory_space<vmem>>, vector<1x128xf32>
    %6 = vector.broadcast %3 : vector<128x1xf32> to vector<128x128xf32>
    %7 = vector.broadcast %4 : vector<1x128xf32> to vector<128x128xf32>
    %8 = arith.mulf %6, %7 : vector<128x128xf32>
    %9 = vector.broadcast %5 : vector<1x128xf32> to vector<128x128xf32>
    %10 = arith.addf %8, %9 : vector<128x128xf32>
    %cst = arith.constant 0.000000e+00 : f32
    %11 = vector.broadcast %cst : f32 to vector<128x128xf32>
    %12 = arith.maximumf %10, %11 : vector<128x128xf32>
    %c0_6 = arith.constant 0 : index
    %c0_7 = arith.constant 0 : index
    %13 = vector.load %arg6[%c0_6, %c0_7] : memref<128x128xf32, #tpu.memory_space<vmem>>, vector<128x128xf32>
    tpu.vector_store %arg6[%c0_6, %c0_7], %12 {strides = array<i32>} : memref<128x128xf32, #tpu.memory_space<vmem>>, vector<128x128xf32>,
    %c0_8 = arith.constant 0 : index
    %c0_9 = arith.constant 0 : index
    %14 = vector.load %arg4[%c0_8, %c0_9] : memref<128x128xf32, #tpu.memory_space<vmem>>, vector<128x128xf32>
    %c0_10 = arith.constant 0 : index
    %c0_11 = arith.constant 0 : index
    %15 = vector.load %arg5[%c0_10, %c0_11] : memref<1x128xf32, #tpu.memory_space<vmem>>, vector<1x128xf32>
    %cst_12 = arith.constant dense<0.000000e+00> : vector<128x128xf32>
    %16 = tpu.matmul %12, %14, %cst_12 {dimension_numbers = #tpu.dot_dimension_numbers<[1], [0], [0], [1], [0, 0, 1, 1], [], []>} : vector<128x128xf32>, vector<128x128xf32>, vector<128x128xf32> -> vector<128x128xf32>
    %17 = vector.broadcast %15 : vector<1x128xf32> to vector<128x128xf32>
    %18 = arith.addf %16, %17 : vector<128x128xf32>
    %c0_13 = arith.constant 0 : index
    %c0_14 = arith.constant 0 : index
    %19 = vector.load %arg7[%c0_13, %c0_14] : memref<2x128xf32, #tpu.memory_space<vmem>>, vector<2x128xf32>
    %cst_15 = arith.constant dense<0.000000e+00> : vector<128xf32>
    %20 = vector.multi_reduction <add>, %18, %cst_15 [0] : vector<128x128xf32> to vector<128xf32>
    %21 = vector.shape_cast %20 : vector<128xf32> to vector<1x128xf32>
    %22 = arith.mulf %18, %18 : vector<128x128xf32>
    %cst_16 = arith.constant dense<0.000000e+00> : vector<128xf32>
    %23 = vector.multi_reduction <add>, %22, %cst_16 [0] : vector<128x128xf32> to vector<128xf32>
    %24 = vector.shape_cast %23 : vector<128xf32> to vector<1x128xf32>
    %25 = tpu.concatenate %21, %24 in 0 : vector<1x128xf32>, vector<1x128xf32> -> vector<2x128xf32>
    %26 = arith.addf %19, %25 : vector<2x128xf32>
    %c0_17 = arith.constant 0 : index
    %c0_18 = arith.constant 0 : index
    %27 = vector.load %arg7[%c0_17, %c0_18] : memref<2x128xf32, #tpu.memory_space<vmem>>, vector<2x128xf32>
    tpu.vector_store %arg7[%c0_17, %c0_18], %26 {strides = array<i32>} : memref<2x128xf32, #tpu.memory_space<vmem>>, vector<2x128xf32>,
    return
  }
  func.func @transform_0(%arg0: i32) -> (i32, i32) {
    %c0_i32 = arith.constant 0 : i32
    %c0_i32_0 = arith.constant 0 : i32
    return %arg0, %c0_i32 : i32, i32
  }
  func.func @transform_1(%arg0: i32) -> (i32, i32) {
    %c0_i32 = arith.constant 0 : i32
    %c0_i32_0 = arith.constant 0 : i32
    %c0_i32_1 = arith.constant 0 : i32
    return %c0_i32, %c0_i32_0 : i32, i32
  }
  func.func @transform_2(%arg0: i32) -> (i32, i32) {
    %c0_i32 = arith.constant 0 : i32
    %c0_i32_0 = arith.constant 0 : i32
    %c0_i32_1 = arith.constant 0 : i32
    return %c0_i32, %c0_i32_0 : i32, i32
  }
  func.func @transform_3(%arg0: i32) -> (i32, i32) {
    %c0_i32 = arith.constant 0 : i32
    %c0_i32_0 = arith.constant 0 : i32
    %c0_i32_1 = arith.constant 0 : i32
    return %c0_i32, %c0_i32_0 : i32, i32
  }
  func.func @transform_4(%arg0: i32) -> (i32, i32) {
    %c0_i32 = arith.constant 0 : i32
    %c0_i32_0 = arith.constant 0 : i32
    %c0_i32_1 = arith.constant 0 : i32
    return %c0_i32, %c0_i32_0 : i32, i32
  }
  func.func @transform_5(%arg0: i32) -> (i32, i32) {
    %c0_i32 = arith.constant 0 : i32
    %c0_i32_0 = arith.constant 0 : i32
    return %arg0, %c0_i32 : i32, i32
  }
  func.func @transform_6(%arg0: i32) -> (i32, i32) {
    %c0_i32 = arith.constant 0 : i32
    %c0_i32_0 = arith.constant 0 : i32
    %c0_i32_1 = arith.constant 0 : i32
    return %c0_i32, %c0_i32_0 : i32, i32
  }
}

module attributes {stable_mosaic.version = 11 : i64} {
  func.func @_apply_kernel(%arg0: i32, %arg1: memref<128x128xf32, #tpu.memory_space<vmem>>, %arg2: memref<128x128xf32, #tpu.memory_space<vmem>>, %arg3: memref<1x128xf32, #tpu.memory_space<vmem>>, %arg4: memref<128x128xf32, #tpu.memory_space<vmem>>) attributes {dimension_semantics = [#tpu.dimension_semantics<parallel>], iteration_bounds = array<i64: 2>, scalar_prefetch = 0 : i64, scratch_operands = 0 : i64, tpu.core_type = #tpu.core_type<tc>, window_params = [{transform_indices = @transform_0, window_bounds = array<i64: 128, 128>}, {pipeline_mode = #tpu.pipeline_mode<synchronous>, transform_indices = @transform_1, window_bounds = array<i64: 128, 128>}, {pipeline_mode = #tpu.pipeline_mode<synchronous>, transform_indices = @transform_2, window_bounds = array<i64: 1, 128>}, {transform_indices = @transform_3, window_bounds = array<i64: 128, 128>}]} {
    %c0 = arith.constant 0 : index
    %c0_0 = arith.constant 0 : index
    %0 = vector.load %arg1[%c0, %c0_0] : memref<128x128xf32, #tpu.memory_space<vmem>>, vector<128x128xf32>
    %c0_1 = arith.constant 0 : index
    %c0_2 = arith.constant 0 : index
    %1 = vector.load %arg2[%c0_1, %c0_2] : memref<128x128xf32, #tpu.memory_space<vmem>>, vector<128x128xf32>
    %c0_3 = arith.constant 0 : index
    %c0_4 = arith.constant 0 : index
    %2 = vector.load %arg3[%c0_3, %c0_4] : memref<1x128xf32, #tpu.memory_space<vmem>>, vector<1x128xf32>
    %cst = arith.constant dense<0.000000e+00> : vector<128x128xf32>
    %3 = tpu.matmul %0, %1, %cst {dimension_numbers = #tpu.dot_dimension_numbers<[1], [0], [0], [1], [0, 0, 1, 1], [], []>} : vector<128x128xf32>, vector<128x128xf32>, vector<128x128xf32> -> vector<128x128xf32>
    %4 = vector.broadcast %2 : vector<1x128xf32> to vector<128x128xf32>
    %5 = arith.addf %3, %4 : vector<128x128xf32>
    %c0_5 = arith.constant 0 : index
    %c0_6 = arith.constant 0 : index
    %6 = vector.load %arg4[%c0_5, %c0_6] : memref<128x128xf32, #tpu.memory_space<vmem>>, vector<128x128xf32>
    tpu.vector_store %arg4[%c0_5, %c0_6], %5 {strides = array<i32>} : memref<128x128xf32, #tpu.memory_space<vmem>>, vector<128x128xf32>,
    return
  }
  func.func @transform_0(%arg0: i32) -> (i32, i32) {
    %c0_i32 = arith.constant 0 : i32
    %c0_i32_0 = arith.constant 0 : i32
    return %arg0, %c0_i32 : i32, i32
  }
  func.func @transform_1(%arg0: i32) -> (i32, i32) {
    %c0_i32 = arith.constant 0 : i32
    %c0_i32_0 = arith.constant 0 : i32
    %c0_i32_1 = arith.constant 0 : i32
    return %c0_i32, %c0_i32_0 : i32, i32
  }
  func.func @transform_2(%arg0: i32) -> (i32, i32) {
    %c0_i32 = arith.constant 0 : i32
    %c0_i32_0 = arith.constant 0 : i32
    %c0_i32_1 = arith.constant 0 : i32
    return %c0_i32, %c0_i32_0 : i32, i32
  }
  func.func @transform_3(%arg0: i32) -> (i32, i32) {
    %c0_i32 = arith.constant 0 : i32
    %c0_i32_0 = arith.constant 0 : i32
    return %arg0, %c0_i32 : i32, i32
  }
}

</mosaic_0001>

<llo_original>
// kernel: fully_connected.3
$region0: #{fully_connected.3}
  #allocation0 [shape = 'u32[]', space=smem, size = 0x4, offset = 0x4, fixed_abs, tag = 'smem constant byte address 0x4 - core index']
  #allocation1 [shape = 'u32[144,128]{1,0:T(1,128)}', space=vmem, size = 0x12000, scoped, tag = 'internal scratch']
  %s0 = inlined_call_operand.vmem [shape: f32[256,1], index: 0, kind: input, shape index: {}]
  %s1 = inlined_call_operand.vmem [shape: f32[1,128], index: 1, kind: input, shape index: {}]
  %s2 = inlined_call_operand.vmem [shape: f32[1,128], index: 2, kind: input, shape index: {}]
  %s3 = inlined_call_operand.vmem [shape: f32[2,128], index: 3, kind: output, shape index: {}]
  %s4 = sld [smem:[#allocation0]]
  $region49: #{fully_connected.3} parent=0
    _
  %s6 = ssub.s32 1, %s4
  %s7 = scalar_select 0, %s6, %s4
  loop: start=0, step=1, limit=4
  $region2: #{fully_connected.3} parent=0 // loop_pre_header
    _
  $region3: #{fully_connected.3} parent=0 // loop_header
    %s9 = sphi 0, %s13
    %p10 = scmp.ge.s32.totalorder %s9, 4
    %s19 = sphi 0, %s21
    %s22 = sphi 0, %s19
    %s23 = sphi 0, %s22
    %s39 = sphi 0, %s23
    %s43 = sphi 0, %s43
    %s45 = sphi 0, %s43
    %s46 = sphi 0, %s45
    %s60 = sphi 0, %s46
    %s64 = sphi 0, %s64
    %s66 = sphi 0, %s64
    %s67 = sphi 0, %s66
    %s81 = sphi 0, %s67
    %s85 = sphi 0, %s85
    %s87 = sphi 0, %s85
    %s88 = sphi 0, %s87
    %s102 = sphi 0, %s88
  $region4: #{fully_connected.3} parent=0 // loop_header_branch
    %12 = sbr.rel (%p10) target = $region8
  $region5: #{fully_connected.3} parent=0 // loop_body
    %s14 = ssub.s32 %s9, 1
    %s15 = ssub.s32 %s9, 2
    %s16 = sadd.s32 %s9, 1
    %s17 = ssub.s32 %s9, %s16
    %p18 = scmp.eq.s32.totalorder %s17, 0
    %s20 = sadd.s32 %s19, 1
    %s21 = scalar_select %p18, %s19, %s20
    %p24 = pneg %p18
    %p25 = scmp.eq.s32.totalorder %s9, 1
    %p26 = por %p24, %p25
    %p27 = scmp.ne.s32.totalorder %s19, %s22
    %p28 = scmp.eq.s32.totalorder %s9, 0
    %p29 = por %p27, %p28
    %p30 = scmp.ne.s32.totalorder %s19, %s22
    %p31 = scmp.eq.s32.totalorder %s14, 1
    %p32 = por %p30, %p31
    %p33 = scmp.ne.s32.totalorder %s22, %s23
    %p34 = scmp.eq.s32.totalorder %s14, 0
    %p35 = por %p33, %p34
    %p36 = scmp.ne.s32.totalorder %s22, %s23
    %p37 = scmp.eq.s32.totalorder %s15, 1
    %p38 = por %p36, %p37
    %p40 = scmp.ne.s32.totalorder %s23, %s39
    %p41 = scmp.eq.s32.totalorder %s15, 0
    %p42 = por %p40, %p41
    %s44 = sadd.s32 %s43, 1
    %p47 = scmp.eq.s32.totalorder %s9, 1
    %p48 = scmp.ne.s32.totalorder %s43, %s45
    %p49 = scmp.eq.s32.totalorder %s9, 0
    %p50 = por %p48, %p49
    %p51 = scmp.ne.s32.totalorder %s43, %s45
    %p52 = scmp.eq.s32.totalorder %s14, 1
    %p53 = por %p51, %p52
    %p54 = scmp.ne.s32.totalorder %s45, %s46
    %p55 = scmp.eq.s32.totalorder %s14, 0
    %p56 = por %p54, %p55
    %p57 = scmp.ne.s32.totalorder %s45, %s46
    %p58 = scmp.eq.s32.totalorder %s15, 1
    %p59 = por %p57, %p58
    %p61 = scmp.ne.s32.totalorder %s46, %s60
    %p62 = scmp.eq.s32.totalorder %s15, 0
    %p63 = por %p61, %p62
    %s65 = sadd.s32 %s64, 1
    %p68 = scmp.eq.s32.totalorder %s9, 1
    %p69 = scmp.ne.s32.totalorder %s64, %s66
    %p70 = scmp.eq.s32.totalorder %s9, 0
    %p71 = por %p69, %p70
    %p72 = scmp.ne.s32.totalorder %s64, %s66
    %p73 = scmp.eq.s32.totalorder %s14, 1
    %p74 = por %p72, %p73
    %p75 = scmp.ne.s32.totalorder %s66, %s67
    %p76 = scmp.eq.s32.totalorder %s14, 0
    %p77 = por %p75, %p76
    %p78 = scmp.ne.s32.totalorder %s66, %s67
    %p79 = scmp.eq.s32.totalorder %s15, 1
    %p80 = por %p78, %p79
    %p82 = scmp.ne.s32.totalorder %s67, %s81
    %p83 = scmp.eq.s32.totalorder %s15, 0
    %p84 = por %p82, %p83
    %s86 = sadd.s32 %s85, 1
    %p89 = scmp.eq.s32.totalorder %s9, 1
    %p90 = scmp.ne.s32.totalorder %s85, %s87
    %p91 = scmp.eq.s32.totalorder %s9, 0
    %p92 = por %p90, %p91
    %p93 = scmp.ne.s32.totalorder %s85, %s87
    %p94 = scmp.eq.s32.totalorder %s14, 1
    %p95 = por %p93, %p94
    %p96 = scmp.ne.s32.totalorder %s87, %s88
    %p97 = scmp.eq.s32.totalorder %s14, 0
    %p98 = por %p96, %p97
    %p99 = scmp.ne.s32.totalorder %s87, %s88
    %p100 = scmp.eq.s32.totalorder %s15, 1
    %p101 = por %p99, %p100
    %p103 = scmp.ne.s32.totalorder %s88, %s102
    %p104 = scmp.eq.s32.totalorder %s15, 0
    %p105 = por %p103, %p104
    %p106 = scmp.le.s32.totalorder 1, %s9
    %p107 = scmp.lt.s32.totalorder %s9, 3
    %p108 = pnand %p106, %p107
    %p109 = pneg %p108
    // Predicated region
    $region9: #{fully_connected.3} parent=5 // pred_check
      _
    $region10: #{fully_connected.3} parent=5 // pred_check_branch
      %111 = sbr.rel (%p108) target = $region12
    $region11: #{fully_connected.3} parent=5 // pred_region
      %s112 = ssub.s32 %s9, 1
      // Predicated region
      $region13: #{fully_connected.3} parent=11 // pred_check
        %p113 = pneg %p56
      $region14: #{fully_connected.3} parent=11 // pred_check_branch
        %115 = sbr.rel (%p113) target = $region16
      $region15: #{fully_connected.3} parent=11 // pred_region
        _
      $region16: #{fully_connected.3} parent=11 // pred_fallthru
        _
      // Predicated region
      $region17: #{fully_connected.3} parent=11 // pred_check
        %p116 = pneg %p77
      $region18: #{fully_connected.3} parent=11 // pred_check_branch
        %118 = sbr.rel (%p116) target = $region20
      $region19: #{fully_connected.3} parent=11 // pred_region
        _
      $region20: #{fully_connected.3} parent=11 // pred_fallthru
        _
    $region12: #{fully_connected.3} parent=5 // pred_fallthru
      _
    %p119 = scmp.lt.s32.totalorder %s9, 2
    // Predicated region
    $region21: #{fully_connected.3} parent=5 // pred_check
      %p120 = pneg %p119
    $region22: #{fully_connected.3} parent=5 // pred_check_branch
      %122 = sbr.rel (%p120) target = $region24
    $region23: #{fully_connected.3} parent=5 // pred_region
      // Predicated region
      $region25: #{fully_connected.3} parent=23 // pred_check
        %p123 = pneg %p29
      $region26: #{fully_connected.3} parent=23 // pred_check_branch
        %125 = sbr.rel (%p123) target = $region28
      $region27: #{fully_connected.3} parent=23 // pred_region
        %s126 = smul.u32 16, %s9
        %p127 = scmp.lt.s32.totalorder %s126, 31
        %s128 = scalar_select %p127, %s126, 31
        %s129 = smul.addr %s128, 8
        %s130 = scalar_lea.vmem %s0, %s129
        %s131 = smul.u32 16, %s9
      $region28: #{fully_connected.3} parent=23 // pred_fallthru
        _
    $region24: #{fully_connected.3} parent=5 // pred_fallthru
      _
    %p132 = scmp.le.s32.totalorder 1, %s9
    %p133 = scmp.lt.s32.totalorder %s9, 3
    %p134 = pnand %p132, %p133
    %p135 = pneg %p134
    // Predicated region
    $region29: #{fully_connected.3} parent=5 // pred_check
      _
    $region30: #{fully_connected.3} parent=5 // pred_check_branch
      %137 = sbr.rel (%p134) target = $region32
    $region31: #{fully_connected.3} parent=5 // pred_region
      %s138 = ssub.s32 %s9, 1
      %s139 = smul.u32 16, %s14
      %p140 = scmp.lt.s32.totalorder %s139, 31
      %s141 = scalar_select %p140, %s139, 31
      %s142 = smul.addr %s141, 8
      %s143 = scalar_lea.vmem %s0, %s142
      %p144 = pneg %p35
      %p145 = pneg %p32
      %p146 = pneg %p56
      %p147 = pneg %p53
      %p148 = pneg %p77
      %p149 = pneg %p74
      %p150 = pneg %p98
      %p151 = pneg %p95
      %s152 = smul.u32 16, %s14
      %p153 = scmp.lt.s32.totalorder %s152, 31
      %s154 = scalar_select %p153, %s152, 31
      %s155 = smul.addr %s154, 8
      %s156 = scalar_lea.vmem %s0, %s155
      %s157 = smul.u32 16, %s14
      %p158 = scmp.eq.s32.totalorder %s14, 0
      // Predicated region
      $region33: #{fully_connected.3} parent=31 // pred_check
        %p159 = pneg %p158
      $region34: #{fully_connected.3} parent=31 // pred_check_branch
        %161 = sbr.rel (%p159) target = $region36
      $region35: #{fully_connected.3} parent=31 // pred_region
        %162 = vst [vmem:[%s3] sm:$0x3] 0.0
      $region36: #{fully_connected.3} parent=31 // pred_fallthru
        _
      %v163 = vld [vmem:[%s156] sm:$0xff]
      %v164 = vld [vmem:[%s156 + $0x8] sm:$0xff]
      %v165 = vld [vmem:[%s156 + $0x10] sm:$0xff]
      %v166 = vld [vmem:[%s156 + $0x18] sm:$0xff]
      %v167 = vld [vmem:[%s156 + $0x20] sm:$0xff]
      %v168 = vld [vmem:[%s156 + $0x28] sm:$0xff]
      %v169 = vld [vmem:[%s156 + $0x30] sm:$0xff]
      %v170 = vld [vmem:[%s156 + $0x38] sm:$0xff]
      %v171 = vld [vmem:[%s156 + $0x40] sm:$0xff]
      %v172 = vld [vmem:[%s156 + $0x48] sm:$0xff]
      %v173 = vld [vmem:[%s156 + $0x50] sm:$0xff]
      %v174 = vld [vmem:[%s156 + $0x58] sm:$0xff]
      %v175 = vld [vmem:[%s156 + $0x60] sm:$0xff]
      %v176 = vld [vmem:[%s156 + $0x68] sm:$0xff]
      %v177 = vld [vmem:[%s156 + $0x70] sm:$0xff]
      %v178 = vld [vmem:[%s156 + $0x78] sm:$0xff]
      %v179 = vld [vmem:[%s1] sm:$0x1]
      %v180 = vld [vmem:[%s2] sm:$0x1]
      %182 = vset.pattern.permute.xlu0 0
      %183 = vperm.xlu0 %182, %v163
      %v184 = vpop.permute.xlu0 %183
      %187 = vset.pattern.permute.xlu0 0
      %188 = vperm.xlu0 %187, %v164
      %v189 = vpop.permute.xlu0 %188
      %192 = vset.pattern.permute.xlu0 0
      %193 = vperm.xlu0 %192, %v165
      %v194 = vpop.permute.xlu0 %193
      %197 = vset.pattern.permute.xlu0 0
      %198 = vperm.xlu0 %197, %v166
      %v199 = vpop.permute.xlu0 %198
      %202 = vset.pattern.permute.xlu0 0
      %203 = vperm.xlu0 %202, %v167
      %v204 = vpop.permute.xlu0 %203
      %207 = vset.pattern.permute.xlu0 0
      %208 = vperm.xlu0 %207, %v168
      %v209 = vpop.permute.xlu0 %208
      %212 = vset.pattern.permute.xlu0 0
      %213 = vperm.xlu0 %212, %v169
      %v214 = vpop.permute.xlu0 %213
      %217 = vset.pattern.permute.xlu0 0
      %218 = vperm.xlu0 %217, %v170
      %v219 = vpop.permute.xlu0 %218
      %222 = vset.pattern.permute.xlu0 0
      %223 = vperm.xlu0 %222, %v171
      %v224 = vpop.permute.xlu0 %223
      %227 = vset.pattern.permute.xlu0 0
      %228 = vperm.xlu0 %227, %v172
      %v229 = vpop.permute.xlu0 %228
      %232 = vset.pattern.permute.xlu0 0
      %233 = vperm.xlu0 %232, %v173
      %v234 = vpop.permute.xlu0 %233
      %237 = vset.pattern.permute.xlu0 0
      %238 = vperm.xlu0 %237, %v174
      %v239 = vpop.permute.xlu0 %238
      %242 = vset.pattern.permute.xlu0 0
      %243 = vperm.xlu0 %242, %v175
      %v244 = vpop.permute.xlu0 %243
      %247 = vset.pattern.permute.xlu0 0
      %248 = vperm.xlu0 %247, %v176
      %v249 = vpop.permute.xlu0 %248
      %252 = vset.pattern.permute.xlu0 0
      %253 = vperm.xlu0 %252, %v177
      %v254 = vpop.permute.xlu0 %253
      %257 = vset.pattern.permute.xlu0 0
      %258 = vperm.xlu0 %257, %v178
      %v259 = vpop.permute.xlu0 %258
      %v262 = vlaneseq
      %v263 = vshrl.u32 %v262, 7
      %v264 = vsub.s32 0, %v263
      %v265 = vrot.slane %v179, %v264
      %v267 = vmul.f32 %v184, %v265
      %v268 = vmul.f32 %v189, %v265
      %v269 = vmul.f32 %v194, %v265
      %v270 = vmul.f32 %v199, %v265
      %v271 = vmul.f32 %v204, %v265
      %v272 = vmul.f32 %v209, %v265
      %v273 = vmul.f32 %v214, %v265
      %v274 = vmul.f32 %v219, %v265
      %v275 = vmul.f32 %v224, %v265
      %v276 = vmul.f32 %v229, %v265
      %v277 = vmul.f32 %v234, %v265
      %v278 = vmul.f32 %v239, %v265
      %v279 = vmul.f32 %v244, %v265
      %v280 = vmul.f32 %v249, %v265
      %v281 = vmul.f32 %v254, %v265
      %v282 = vmul.f32 %v259, %v265
      %v284 = vlaneseq
      %v285 = vshrl.u32 %v284, 7
      %v286 = vsub.s32 0, %v285
      %v287 = vrot.slane %v180, %v286
      %v289 = vadd.f32 %v267, %v287
      %v290 = vadd.f32 %v268, %v287
      %v291 = vadd.f32 %v269, %v287
      %v292 = vadd.f32 %v270, %v287
      %v293 = vadd.f32 %v271, %v287
      %v294 = vadd.f32 %v272, %v287
      %v295 = vadd.f32 %v273, %v287
      %v296 = vadd.f32 %v274, %v287
      %v297 = vadd.f32 %v275, %v287
      %v298 = vadd.f32 %v276, %v287
      %v299 = vadd.f32 %v277, %v287
      %v300 = vadd.f32 %v278, %v287
      %v301 = vadd.f32 %v279, %v287
      %v302 = vadd.f32 %v280, %v287
      %v303 = vadd.f32 %v281, %v287
      %v304 = vadd.f32 %v282, %v287
      %v305 = vld [vmem:[%s3] sm:$0x3]
      %v306 = vadd.f32 %v289, %v290
      %v307 = vadd.f32 %v306, %v291
      %v308 = vadd.f32 %v307, %v292
      %v309 = vadd.f32 %v308, %v293
      %v310 = vadd.f32 %v309, %v294
      %v311 = vadd.f32 %v310, %v295
      %v312 = vadd.f32 %v311, %v296
      %v313 = vadd.f32 %v312, %v297
      %v314 = vadd.f32 %v313, %v298
      %v315 = vadd.f32 %v314, %v299
      %v316 = vadd.f32 %v315, %v300
      %v317 = vadd.f32 %v316, %v301
      %v318 = vadd.f32 %v317, %v302
      %v319 = vadd.f32 %v318, %v303
      %v320 = vadd.f32 %v319, %v304
      %v321 = vrot.slane %v320, 4
      %v322 = vadd.f32 %v320, %v321
      %v323 = vrot.slane %v322, 2
      %v324 = vadd.f32 %v322, %v323
      %v325 = vrot.slane %v324, 1
      %v326 = vadd.f32 %v324, %v325
      %v327 = vmul.f32 %v289, %v289
      %v328 = vmul.f32 %v290, %v290
      %v329 = vmul.f32 %v291, %v291
      %v330 = vmul.f32 %v292, %v292
      %v331 = vmul.f32 %v293, %v293
      %v332 = vmul.f32 %v294, %v294
      %v333 = vmul.f32 %v295, %v295
      %v334 = vmul.f32 %v296, %v296
      %v335 = vmul.f32 %v297, %v297
      %v336 = vmul.f32 %v298, %v298
      %v337 = vmul.f32 %v299, %v299
      %v338 = vmul.f32 %v300, %v300
      %v339 = vmul.f32 %v301, %v301
      %v340 = vmul.f32 %v302, %v302
      %v341 = vmul.f32 %v303, %v303
      %v342 = vmul.f32 %v304, %v304
      %v343 = vadd.f32 %v327, %v328
      %v344 = vadd.f32 %v343, %v329
      %v345 = vadd.f32 %v344, %v330
      %v346 = vadd.f32 %v345, %v331
      %v347 = vadd.f32 %v346, %v332
      %v348 = vadd.f32 %v347, %v333
      %v349 = vadd.f32 %v348, %v334
      %v350 = vadd.f32 %v349, %v335
      %v351 = vadd.f32 %v350, %v336
      %v352 = vadd.f32 %v351, %v337
      %v353 = vadd.f32 %v352, %v338
      %v354 = vadd.f32 %v353, %v339
      %v355 = vadd.f32 %v354, %v340
      %v356 = vadd.f32 %v355, %v341
      %v357 = vadd.f32 %v356, %v342
      %v358 = vrot.slane %v357, 4
      %v359 = vadd.f32 %v357, %v358
      %v360 = vrot.slane %v359, 2
      %v361 = vadd.f32 %v359, %v360
      %v362 = vrot.slane %v361, 1
      %v363 = vadd.f32 %v361, %v362
      %vm364 = vcmask 1040384
      %v365 = vsel %vm364, %v326, %v363
      %v366 = vadd.f32 %v305, %v365
      %367 = vst [vmem:[%s3] sm:$0x3] %v366
      // Predicated region
      $region37: #{fully_connected.3} parent=31 // pred_check
        %p368 = pneg %p95
      $region38: #{fully_connected.3} parent=31 // pred_check_branch
        %370 = sbr.rel (%p368) target = $region40
      $region39: #{fully_connected.3} parent=31 // pred_region
        _
      $region40: #{fully_connected.3} parent=31 // pred_fallthru
        _
      // Predicated region
      $region41: #{fully_connected.3} parent=31 // pred_check
        %p371 = pneg %p95
      $region42: #{fully_connected.3} parent=31 // pred_check_branch
        %373 = sbr.rel (%p371) target = $region44
      $region43: #{fully_connected.3} parent=31 // pred_region
        _
      $region44: #{fully_connected.3} parent=31 // pred_fallthru
        _
    $region32: #{fully_connected.3} parent=5 // pred_fallthru
      _
    %p374 = scmp.le.s32.totalorder 2, %s9
    // Predicated region
    $region45: #{fully_connected.3} parent=5 // pred_check
      %p375 = pneg %p374
    $region46: #{fully_connected.3} parent=5 // pred_check_branch
      %377 = sbr.rel (%p375) target = $region48
    $region47: #{fully_connected.3} parent=5 // pred_region
      %s378 = ssub.s32 %s9, 2
    $region48: #{fully_connected.3} parent=5 // pred_fallthru
      _
  $region6: #{fully_connected.3} parent=0 // loop_footer
    %s13 = sadd.s32 1, %s9
  $region7: #{fully_connected.3} parent=0 // loop_footer_branch
    %8 = sbr.rel target = $region3
  $region8: #{fully_connected.3} parent=0 // loop_exit
    _

// kernel: fully_connected.5
$region0: #{fully_connected.5}
  #allocation0 [shape = 'u32[]', space=smem, size = 0x4, offset = 0x4, fixed_abs, tag = 'smem constant byte address 0x4 - core index']
  #allocation1 [shape = 'u32[144,128]{1,0:T(1,128)}', space=vmem, size = 0x12000, scoped, tag = 'internal scratch']
  %s0 = inlined_call_operand.vmem [shape: f32[256,128], index: 0, kind: input, shape index: {}]
  %s1 = inlined_call_operand.vmem [shape: f32[128,128], index: 1, kind: input, shape index: {}]
  %s2 = inlined_call_operand.vmem [shape: f32[1,128], index: 2, kind: input, shape index: {}]
  %s3 = inlined_call_operand.hbm [shape: f32[256,128], index: 3, kind: output, shape index: {}]
  %s4 = sld [smem:[#allocation0]]
  $region45: #{fully_connected.5} parent=0
    _
  %s6 = ssub.s32 1, %s4
  %s7 = scalar_select 0, %s6, %s4
  $region1: #{fully_connected.5} parent=0
    #allocation2 [shape = 'u8[131072]{0}', space=vmem, size = 0x20000, scoped, tag = 'output window, operand 0']
    #allocation3 [shape = 's32[2]{0}', space=sflag, size = 0x8, scoped, tag = 'scoped memory for fully_connected.5']
    %8 = vsyncpa [#allocation3], 0
    %s9 = scalar_lea.sflag [#allocation3], 1
    %10 = vsyncpa %s9, 0
    loop: start=0, step=1, limit=4
    $region2: #{fully_connected.5} parent=1 // loop_pre_header
      _
    $region3: #{fully_connected.5} parent=1 // loop_header
      %s12 = sphi 0, %s16
      %p13 = scmp.ge.s32.totalorder %s12, 4
      %s22 = sphi 0, %s24
      %s25 = sphi 0, %s22
      %s26 = sphi 0, %s25
      %s42 = sphi 0, %s26
      %s46 = sphi 0, %s46
      %s48 = sphi 0, %s46
      %s49 = sphi 0, %s48
      %s63 = sphi 0, %s49
      %s67 = sphi 0, %s67
      %s69 = sphi 0, %s67
      %s70 = sphi 0, %s69
      %s84 = sphi 0, %s70
      %s90 = sphi 0, %s92
      %s93 = sphi 0, %s90
      %s94 = sphi 0, %s93
      %s110 = sphi 0, %s94
    $region4: #{fully_connected.5} parent=1 // loop_header_branch
      %15 = sbr.rel (%p13) target = $region8
    $region5: #{fully_connected.5} parent=1 // loop_body
      %s17 = ssub.s32 %s12, 1
      %s18 = ssub.s32 %s12, 2
      %s19 = sadd.s32 %s12, 1
      %s20 = ssub.s32 %s12, %s19
      %p21 = scmp.eq.s32.totalorder %s20, 0
      %s23 = sadd.s32 %s22, 1
      %s24 = scalar_select %p21, %s22, %s23
      %p27 = pneg %p21
      %p28 = scmp.eq.s32.totalorder %s12, 1
      %p29 = por %p27, %p28
      %p30 = scmp.ne.s32.totalorder %s22, %s25
      %p31 = scmp.eq.s32.totalorder %s12, 0
      %p32 = por %p30, %p31
      %p33 = scmp.ne.s32.totalorder %s22, %s25
      %p34 = scmp.eq.s32.totalorder %s17, 1
      %p35 = por %p33, %p34
      %p36 = scmp.ne.s32.totalorder %s25, %s26
      %p37 = scmp.eq.s32.totalorder %s17, 0
      %p38 = por %p36, %p37
      %p39 = scmp.ne.s32.totalorder %s25, %s26
      %p40 = scmp.eq.s32.totalorder %s18, 1
      %p41 = por %p39, %p40
      %p43 = scmp.ne.s32.totalorder %s26, %s42
      %p44 = scmp.eq.s32.totalorder %s18, 0
      %p45 = por %p43, %p44
      %s47 = sadd.s32 %s46, 1
      %p50 = scmp.eq.s32.totalorder %s12, 1
      %p51 = scmp.ne.s32.totalorder %s46, %s48
      %p52 = scmp.eq.s32.totalorder %s12, 0
      %p53 = por %p51, %p52
      %p54 = scmp.ne.s32.totalorder %s46, %s48
      %p55 = scmp.eq.s32.totalorder %s17, 1
      %p56 = por %p54, %p55
      %p57 = scmp.ne.s32.totalorder %s48, %s49
      %p58 = scmp.eq.s32.totalorder %s17, 0
      %p59 = por %p57, %p58
      %p60 = scmp.ne.s32.totalorder %s48, %s49
      %p61 = scmp.eq.s32.totalorder %s18, 1
      %p62 = por %p60, %p61
      %p64 = scmp.ne.s32.totalorder %s49, %s63
      %p65 = scmp.eq.s32.totalorder %s18, 0
      %p66 = por %p64, %p65
      %s68 = sadd.s32 %s67, 1
      %p71 = scmp.eq.s32.totalorder %s12, 1
      %p72 = scmp.ne.s32.totalorder %s67, %s69
      %p73 = scmp.eq.s32.totalorder %s12, 0
      %p74 = por %p72, %p73
      %p75 = scmp.ne.s32.totalorder %s67, %s69
      %p76 = scmp.eq.s32.totalorder %s17, 1
      %p77 = por %p75, %p76
      %p78 = scmp.ne.s32.totalorder %s69, %s70
      %p79 = scmp.eq.s32.totalorder %s17, 0
      %p80 = por %p78, %p79
      %p81 = scmp.ne.s32.totalorder %s69, %s70
      %p82 = scmp.eq.s32.totalorder %s18, 1
      %p83 = por %p81, %p82
      %p85 = scmp.ne.s32.totalorder %s70, %s84
      %p86 = scmp.eq.s32.totalorder %s18, 0
      %p87 = por %p85, %p86
      %s88 = ssub.s32 %s12, %s19
      %p89 = scmp.eq.s32.totalorder %s88, 0
      %s91 = sadd.s32 %s90, 1
      %s92 = scalar_select %p89, %s90, %s91
      %p95 = pneg %p89
      %p96 = scmp.eq.s32.totalorder %s12, 1
      %p97 = por %p95, %p96
      %p98 = scmp.ne.s32.totalorder %s90, %s93
      %p99 = scmp.eq.s32.totalorder %s12, 0
      %p100 = por %p98, %p99
      %p101 = scmp.ne.s32.totalorder %s90, %s93
      %p102 = scmp.eq.s32.totalorder %s17, 1
      %p103 = por %p101, %p102
      %p104 = scmp.ne.s32.totalorder %s93, %s94
      %p105 = scmp.eq.s32.totalorder %s17, 0
      %p106 = por %p104, %p105
      %p107 = scmp.ne.s32.totalorder %s93, %s94
      %p108 = scmp.eq.s32.totalorder %s18, 1
      %p109 = por %p107, %p108
      %p111 = scmp.ne.s32.totalorder %s94, %s110
      %p112 = scmp.eq.s32.totalorder %s18, 0
      %p113 = por %p111, %p112
      %p114 = scmp.le.s32.totalorder 1, %s12
      %p115 = scmp.lt.s32.totalorder %s12, 3
      %p116 = pnand %p114, %p115
      %p117 = pneg %p116
      // Predicated region
      $region9: #{fully_connected.5} parent=5 // pred_check
        _
      $region10: #{fully_connected.5} parent=5 // pred_check_branch
        %119 = sbr.rel (%p116) target = $region12
      $region11: #{fully_connected.5} parent=5 // pred_region
        %s120 = ssub.s32 %s12, 1
        // Predicated region
        $region13: #{fully_connected.5} parent=11 // pred_check
          %p121 = pneg %p59
        $region14: #{fully_connected.5} parent=11 // pred_check_branch
          %123 = sbr.rel (%p121) target = $region16
        $region15: #{fully_connected.5} parent=11 // pred_region
          _
        $region16: #{fully_connected.5} parent=11 // pred_fallthru
          _
        // Predicated region
        $region17: #{fully_connected.5} parent=11 // pred_check
          %p124 = pneg %p80
        $region18: #{fully_connected.5} parent=11 // pred_check_branch
          %126 = sbr.rel (%p124) target = $region20
        $region19: #{fully_connected.5} parent=11 // pred_region
          _
        $region20: #{fully_connected.5} parent=11 // pred_fallthru
          _
      $region12: #{fully_connected.5} parent=5 // pred_fallthru
        _
      %p127 = scmp.lt.s32.totalorder %s12, 2
      // Predicated region
      $region21: #{fully_connected.5} parent=5 // pred_check
        %p128 = pneg %p127
      $region22: #{fully_connected.5} parent=5 // pred_check_branch
        %130 = sbr.rel (%p128) target = $region24
      $region23: #{fully_connected.5} parent=5 // pred_region
        // Predicated region
        $region25: #{fully_connected.5} parent=23 // pred_check
          %p131 = pneg %p32
        $region26: #{fully_connected.5} parent=23 // pred_check_branch
          %133 = sbr.rel (%p131) target = $region28
        $region27: #{fully_connected.5} parent=23 // pred_region
          %s134 = smul.u32 16, %s12
          %p135 = scmp.lt.s32.totalorder %s134, 31
          %s136 = scalar_select %p135, %s134, 31
          %s137 = smul.addr %s136, 8
          %s138 = scalar_lea.vmem %s0, %s137
          %s139 = smul.u32 16, %s12
        $region28: #{fully_connected.5} parent=23 // pred_fallthru
          _
      $region24: #{fully_connected.5} parent=5 // pred_fallthru
        _
      %p140 = scmp.le.s32.totalorder 1, %s12
      %p141 = scmp.lt.s32.totalorder %s12, 3
      %p142 = pnand %p140, %p141
      %p143 = pneg %p142
      // Predicated region
      $region29: #{fully_connected.5} parent=5 // pred_check
        _
      $region30: #{fully_connected.5} parent=5 // pred_check_branch
        %145 = sbr.rel (%p142) target = $region32
      $region31: #{fully_connected.5} parent=5 // pred_region
        %s146 = ssub.s32 %s12, 1
        %s147 = smul.u32 16, %s17
        %p148 = scmp.lt.s32.totalorder %s147, 31
        %s149 = scalar_select %p148, %s147, 31
        %s150 = smul.addr %s149, 8
        %s151 = scalar_lea.vmem %s0, %s150
        %p152 = pneg %p38
        %p153 = pneg %p35
        %p154 = pneg %p59
        %p155 = pneg %p56
        %p156 = pneg %p80
        %p157 = pneg %p77
        %p158 = pneg %p106
        %p159 = pneg %p103
        %s160 = sand.u32 %s93, 1
        %s161 = scalar_lea.sflag [#allocation3], %s160
        %s162 = sand.u32 %s93, 1
        %s163 = smul.addr %s162, 128
        %s164 = scalar_lea.vmem [#allocation2], %s163
        %s165 = smul.u32 16, %s17
        %p166 = scmp.lt.s32.totalorder %s165, 31
        %s167 = scalar_select %p166, %s165, 31
        %s168 = smul.addr %s167, 8
        %s169 = scalar_lea.vmem %s0, %s168
        %s170 = smul.u32 16, %s17
        %s171 = smul.u32 16, %s17
        %v172 = vld [vmem:[%s169] sm:$0xff]
        %v173 = vld [vmem:[%s169 + $0x8] sm:$0xff]
        %v174 = vld [vmem:[%s169 + $0x10] sm:$0xff]
        %v175 = vld [vmem:[%s169 + $0x18] sm:$0xff]
        %v176 = vld [vmem:[%s169 + $0x20] sm:$0xff]
        %v177 = vld [vmem:[%s169 + $0x28] sm:$0xff]
        %v178 = vld [vmem:[%s169 + $0x30] sm:$0xff]
        %v179 = vld [vmem:[%s169 + $0x38] sm:$0xff]
        %v180 = vld [vmem:[%s169 + $0x40] sm:$0xff]
        %v181 = vld [vmem:[%s169 + $0x48] sm:$0xff]
        %v182 = vld [vmem:[%s169 + $0x50] sm:$0xff]
        %v183 = vld [vmem:[%s169 + $0x58] sm:$0xff]
        %v184 = vld [vmem:[%s169 + $0x60] sm:$0xff]
        %v185 = vld [vmem:[%s169 + $0x68] sm:$0xff]
        %v186 = vld [vmem:[%s169 + $0x70] sm:$0xff]
        %v187 = vld [vmem:[%s169 + $0x78] sm:$0xff]
        %v188 = vld [vmem:[%s1] sm:$0xff]
        %v189 = vld [vmem:[%s1 + $0x8] sm:$0xff]
        %v190 = vld [vmem:[%s1 + $0x10] sm:$0xff]
        %v191 = vld [vmem:[%s1 + $0x18] sm:$0xff]
        %v192 = vld [vmem:[%s1 + $0x20] sm:$0xff]
        %v193 = vld [vmem:[%s1 + $0x28] sm:$0xff]
        %v194 = vld [vmem:[%s1 + $0x30] sm:$0xff]
        %v195 = vld [vmem:[%s1 + $0x38] sm:$0xff]
        %v196 = vld [vmem:[%s1 + $0x40] sm:$0xff]
        %v197 = vld [vmem:[%s1 + $0x48] sm:$0xff]
        %v198 = vld [vmem:[%s1 + $0x50] sm:$0xff]
        %v199 = vld [vmem:[%s1 + $0x58] sm:$0xff]
        %v200 = vld [vmem:[%s1 + $0x60] sm:$0xff]
        %v201 = vld [vmem:[%s1 + $0x68] sm:$0xff]
        %v202 = vld [vmem:[%s1 + $0x70] sm:$0xff]
        %v203 = vld [vmem:[%s1 + $0x78] sm:$0xff]
        %v204 = vld [vmem:[%s2] sm:$0x1]
        %v206 = vlaneseq
        %v207 = vshrl.u32 %v206, 7
        %v208 = vsub.s32 0, %v207
        %v209 = vrot.slane %v204, %v208
        %211 = vmatprep.subr.mxu0 0.0
        %212 = vmatpush1.msra.mxu0 %v188
        %213 = vmatprep.subr.mxu0 0.0
        %214 = vmatpush1.msra.mxu0 %v189
        %215 = vmatprep.subr.mxu0 0.0
        %216 = vmatpush1.msra.mxu0 %v190
        %217 = vmatprep.subr.mxu0 0.0
        %218 = vmatpush1.msra.mxu0 %v191
        %219 = vmatprep.subr.mxu0 0.0
        %220 = vmatpush1.msra.mxu0 %v192
        %221 = vmatprep.subr.mxu0 0.0
        %222 = vmatpush1.msra.mxu0 %v193
        %223 = vmatprep.subr.mxu0 0.0
        %224 = vmatpush1.msra.mxu0 %v194
        %225 = vmatprep.subr.mxu0 0.0
        %226 = vmatpush1.msra.mxu0 %v195
        %227 = vmatprep.subr.mxu0 0.0
        %228 = vmatpush1.msra.mxu0 %v196
        %229 = vmatprep.subr.mxu0 0.0
        %230 = vmatpush1.msra.mxu0 %v197
        %231 = vmatprep.subr.mxu0 0.0
        %232 = vmatpush1.msra.mxu0 %v198
        %233 = vmatprep.subr.mxu0 0.0
        %234 = vmatpush1.msra.mxu0 %v199
        %235 = vmatprep.subr.mxu0 0.0
        %236 = vmatpush1.msra.mxu0 %v200
        %237 = vmatprep.subr.mxu0 0.0
        %238 = vmatpush1.msra.mxu0 %v201
        %239 = vmatprep.subr.mxu0 0.0
        %240 = vmatpush1.msra.mxu0 %v202
        %241 = vmatprep.subr.mxu0 0.0
        %242 = vmatpush1.msra.mxu0 %v203
        %243 = vmatprep.subr.mxu0 0.0
        %244 = vmatpush1.msra.mxu0 0.0
        %245 = vmatprep.subr.mxu0 0.0
        %246 = vmatpush1.msra.mxu0 0.0
        %247 = vmatprep.subr.mxu0 0.0
        %248 = vmatpush1.msra.mxu0 0.0
        %249 = vmatprep.subr.mxu0 0.0
        %250 = vmatpush1.msra.mxu0 0.0
        %251 = vmatprep.subr.mxu0 0.0
        %252 = vmatpush1.msra.mxu0 0.0
        %253 = vmatprep.subr.mxu0 0.0
        %254 = vmatpush1.msra.mxu0 0.0
        %255 = vmatprep.subr.mxu0 0.0
        %256 = vmatpush1.msra.mxu0 0.0
        %257 = vmatprep.subr.mxu0 0.0
        %258 = vmatpush1.msra.mxu0 0.0
        %259 = vmatprep.subr.mxu0 0.0
        %260 = vmatpush1.msra.mxu0 0.0
        %261 = vmatprep.subr.mxu0 0.0
        %262 = vmatpush1.msra.mxu0 0.0
        %263 = vmatprep.subr.mxu0 0.0
        %264 = vmatpush1.msra.mxu0 0.0
        %265 = vmatprep.subr.mxu0 0.0
        %266 = vmatpush1.msra.mxu0 0.0
        %267 = vmatprep.subr.mxu0 0.0
        %268 = vmatpush1.msra.mxu0 0.0
        %269 = vmatprep.subr.mxu0 0.0
        %270 = vmatpush1.msra.mxu0 0.0
        %271 = vmatprep.subr.mxu0 0.0
        %272 = vmatpush1.msra.mxu0 0.0
        %273 = vmatprep.subr.mxu0 0.0
        %274 = vmatpush1.msra.mxu0 0.0
        %275 = vmatprep.mubr.f32.mxu0 0.0
        %276 = vmatmul.mubr.f32.gmra.mrb[0].mxu0 %v172
        %v277 = vpop.f32.mrb[0].mxu0
        %v278 = vadd.f32 %v209, %v277
        %v279 = vpop.f32.mrb[0].mxu0
        %280 = vmatprep.mubr.f32.mxu0 0.0
        %281 = vmatmul.mubr.f32.gmra.mrb[0].mxu0 %v173
        %v282 = vpop.f32.mrb[0].mxu0
        %v283 = vadd.f32 %v209, %v282
        %v284 = vpop.f32.mrb[0].mxu0
        %285 = vmatprep.mubr.f32.mxu0 0.0
        %286 = vmatmul.mubr.f32.gmra.mrb[0].mxu0 %v174
        %v287 = vpop.f32.mrb[0].mxu0
        %v288 = vadd.f32 %v209, %v287
        %v289 = vpop.f32.mrb[0].mxu0
        %290 = vmatprep.mubr.f32.mxu0 0.0
        %291 = vmatmul.mubr.f32.gmra.mrb[0].mxu0 %v175
        %v292 = vpop.f32.mrb[0].mxu0
        %v293 = vadd.f32 %v209, %v292
        %v294 = vpop.f32.mrb[0].mxu0
        %295 = vmatprep.mubr.f32.mxu0 0.0
        %296 = vmatmul.mubr.f32.gmra.mrb[0].mxu0 %v176
        %v297 = vpop.f32.mrb[0].mxu0
        %v298 = vadd.f32 %v209, %v297
        %v299 = vpop.f32.mrb[0].mxu0
        %300 = vmatprep.mubr.f32.mxu0 0.0
        %301 = vmatmul.mubr.f32.gmra.mrb[0].mxu0 %v177
        %v302 = vpop.f32.mrb[0].mxu0
        %v303 = vadd.f32 %v209, %v302
        %v304 = vpop.f32.mrb[0].mxu0
        %305 = vmatprep.mubr.f32.mxu0 0.0
        %306 = vmatmul.mubr.f32.gmra.mrb[0].mxu0 %v178
        %v307 = vpop.f32.mrb[0].mxu0
        %v308 = vadd.f32 %v209, %v307
        %v309 = vpop.f32.mrb[0].mxu0
        %310 = vmatprep.mubr.f32.mxu0 0.0
        %311 = vmatmul.mubr.f32.gmra.mrb[0].mxu0 %v179
        %v312 = vpop.f32.mrb[0].mxu0
        %v313 = vadd.f32 %v209, %v312
        %v314 = vpop.f32.mrb[0].mxu0
        %315 = vmatprep.mubr.f32.mxu0 0.0
        %316 = vmatmul.mubr.f32.gmra.mrb[0].mxu0 %v180
        %v317 = vpop.f32.mrb[0].mxu0
        %v318 = vadd.f32 %v209, %v317
        %v319 = vpop.f32.mrb[0].mxu0
        %320 = vmatprep.mubr.f32.mxu0 0.0
        %321 = vmatmul.mubr.f32.gmra.mrb[0].mxu0 %v181
        %v322 = vpop.f32.mrb[0].mxu0
        %v323 = vadd.f32 %v209, %v322
        %v324 = vpop.f32.mrb[0].mxu0
        %325 = vmatprep.mubr.f32.mxu0 0.0
        %326 = vmatmul.mubr.f32.gmra.mrb[0].mxu0 %v182
        %v327 = vpop.f32.mrb[0].mxu0
        %v328 = vadd.f32 %v209, %v327
        %v329 = vpop.f32.mrb[0].mxu0
        %330 = vmatprep.mubr.f32.mxu0 0.0
        %331 = vmatmul.mubr.f32.gmra.mrb[0].mxu0 %v183
        %v332 = vpop.f32.mrb[0].mxu0
        %v333 = vadd.f32 %v209, %v332
        %v334 = vpop.f32.mrb[0].mxu0
        %335 = vmatprep.mubr.f32.mxu0 0.0
        %336 = vmatmul.mubr.f32.gmra.mrb[0].mxu0 %v184
        %v337 = vpop.f32.mrb[0].mxu0
        %v338 = vadd.f32 %v209, %v337
        %v339 = vpop.f32.mrb[0].mxu0
        %340 = vmatprep.mubr.f32.mxu0 0.0
        %341 = vmatmul.mubr.f32.gmra.mrb[0].mxu0 %v185
        %v342 = vpop.f32.mrb[0].mxu0
        %v343 = vadd.f32 %v209, %v342
        %v344 = vpop.f32.mrb[0].mxu0
        %345 = vmatprep.mubr.f32.mxu0 0.0
        %346 = vmatmul.mubr.f32.gmra.mrb[0].mxu0 %v186
        %v347 = vpop.f32.mrb[0].mxu0
        %v348 = vadd.f32 %v209, %v347
        %v349 = vpop.f32.mrb[0].mxu0
        %350 = vmatprep.mubr.f32.mxu0 0.0
        %351 = vmatmul.mubr.f32.gmra.mrb[0].mxu0 %v187
        %v352 = vpop.f32.mrb[0].mxu0
        %v353 = vadd.f32 %v209, %v352
        %v354 = vpop.f32.mrb[0].mxu0
        %355 = vdwg.mxu0
        %356 = vst [vmem:[%s164] sm:$0xff] %v278
        %357 = vst [vmem:[%s164 + $0x8] sm:$0xff] %v283
        %358 = vst [vmem:[%s164 + $0x10] sm:$0xff] %v288
        %359 = vst [vmem:[%s164 + $0x18] sm:$0xff] %v293
        %360 = vst [vmem:[%s164 + $0x20] sm:$0xff] %v298
        %361 = vst [vmem:[%s164 + $0x28] sm:$0xff] %v303
        %362 = vst [vmem:[%s164 + $0x30] sm:$0xff] %v308
        %363 = vst [vmem:[%s164 + $0x38] sm:$0xff] %v313
        %364 = vst [vmem:[%s164 + $0x40] sm:$0xff] %v318
        %365 = vst [vmem:[%s164 + $0x48] sm:$0xff] %v323
        %366 = vst [vmem:[%s164 + $0x50] sm:$0xff] %v328
        %367 = vst [vmem:[%s164 + $0x58] sm:$0xff] %v333
        %368 = vst [vmem:[%s164 + $0x60] sm:$0xff] %v338
        %369 = vst [vmem:[%s164 + $0x68] sm:$0xff] %v343
        %370 = vst [vmem:[%s164 + $0x70] sm:$0xff] %v348
        %371 = vst [vmem:[%s164 + $0x78] sm:$0xff] %v353
        %s372 = sand.u32 %s93, 1
        %s373 = scalar_lea.sflag [#allocation3], %s372
        %s374 = sand.u32 %s93, 1
        %s375 = smul.addr %s374, 128
        %s376 = scalar_lea.vmem [#allocation2], %s375
        // Predicated region
        $region33: #{fully_connected.5} parent=31 // pred_check
          %p377 = pneg %p103
        $region34: #{fully_connected.5} parent=31 // pred_check_branch
          %379 = sbr.rel (%p377) target = $region36
        $region35: #{fully_connected.5} parent=31 // pred_region
          %s380 = smul.u32 16, %s17
          %s382 = ssub.s32 2048, 2048
          %383 = vsyncadd %s373, %s382
          %s384 = smul.addr %s380, 128
          %s385 = scalar_lea.hbm %s3, %s384
          %s386 = sshll.u32 %s376, 4
          %s387 = int_to_ptr.vmem [resolvable:$true] %s386
          %392 = dma.vmem_to_hbm [thread:$0]  %s387, 2048, %s385, %s373, 128, 128, 8
        $region36: #{fully_connected.5} parent=31 // pred_fallthru
          _
      $region32: #{fully_connected.5} parent=5 // pred_fallthru
        _
      %p393 = scmp.le.s32.totalorder 2, %s12
      // Predicated region
      $region37: #{fully_connected.5} parent=5 // pred_check
        %p394 = pneg %p393
      $region38: #{fully_connected.5} parent=5 // pred_check_branch
        %396 = sbr.rel (%p394) target = $region40
      $region39: #{fully_connected.5} parent=5 // pred_region
        %s397 = ssub.s32 %s12, 2
        // Predicated region
        $region41: #{fully_connected.5} parent=39 // pred_check
          %p398 = pneg %p109
        $region42: #{fully_connected.5} parent=39 // pred_check_branch
          %400 = sbr.rel (%p398) target = $region44
        $region43: #{fully_connected.5} parent=39 // pred_region
          %s401 = sand.u32 %s94, 1
          %s402 = scalar_lea.sflag [#allocation3], %s401
          %s403 = sand.u32 %s94, 1
          %s404 = smul.addr %s403, 128
          %s405 = scalar_lea.vmem [#allocation2], %s404
          %406 = dma.done %s402, 2048
        $region44: #{fully_connected.5} parent=39 // pred_fallthru
          _
      $region40: #{fully_connected.5} parent=5 // pred_fallthru
        _
    $region6: #{fully_connected.5} parent=1 // loop_footer
      %s16 = sadd.s32 1, %s12
    $region7: #{fully_connected.5} parent=1 // loop_footer_branch
      %11 = sbr.rel target = $region3
    $region8: #{fully_connected.5} parent=1 // loop_exit
      _
    %407 = vsyncpa [#allocation3], 1
    %s408 = scalar_lea.sflag [#allocation3], 1
    %409 = vsyncpa %s408, 1

// kernel: fully_connected.4
$region0: #{fully_connected.4}
  #allocation0 [shape = 'u32[]', space=smem, size = 0x4, offset = 0x4, fixed_abs, tag = 'smem constant byte address 0x4 - core index']
  #allocation1 [shape = 'u32[144,128]{1,0:T(1,128)}', space=vmem, size = 0x12000, scoped, tag = 'internal scratch']
  %s0 = inlined_call_operand.vmem [shape: f32[256,1], index: 0, kind: input, shape index: {}]
  %s1 = inlined_call_operand.vmem [shape: f32[1,128], index: 1, kind: input, shape index: {}]
  %s2 = inlined_call_operand.vmem [shape: f32[1,128], index: 2, kind: input, shape index: {}]
  %s3 = inlined_call_operand.vmem [shape: f32[128,128], index: 3, kind: input, shape index: {}]
  %s4 = inlined_call_operand.vmem [shape: f32[1,128], index: 4, kind: input, shape index: {}]
  %s5 = inlined_call_operand.vmem [shape: f32[256,128], index: 5, kind: output, shape index: {0}]
  %s6 = inlined_call_operand.vmem [shape: f32[2,128], index: 6, kind: output, shape index: {1}]
  %7 = xla_tuple %s5, %s6
  %s8 = sld [smem:[#allocation0]]
  $region65: #{fully_connected.4} parent=0
    _
  %s10 = ssub.s32 1, %s8
  %s11 = scalar_select 0, %s10, %s8
  loop: start=0, step=1, limit=4
  $region2: #{fully_connected.4} parent=0 // loop_pre_header
    _
  $region3: #{fully_connected.4} parent=0 // loop_header
    %s13 = sphi 0, %s17
    %p14 = scmp.ge.s32.totalorder %s13, 4
    %s23 = sphi 0, %s25
    %s26 = sphi 0, %s23
    %s27 = sphi 0, %s26
    %s43 = sphi 0, %s27
    %s47 = sphi 0, %s47
    %s49 = sphi 0, %s47
    %s50 = sphi 0, %s49
    %s64 = sphi 0, %s50
    %s68 = sphi 0, %s68
    %s70 = sphi 0, %s68
    %s71 = sphi 0, %s70
    %s85 = sphi 0, %s71
    %s89 = sphi 0, %s89
    %s91 = sphi 0, %s89
    %s92 = sphi 0, %s91
    %s106 = sphi 0, %s92
    %s110 = sphi 0, %s110
    %s112 = sphi 0, %s110
    %s113 = sphi 0, %s112
    %s127 = sphi 0, %s113
    %s133 = sphi 0, %s135
    %s136 = sphi 0, %s133
    %s137 = sphi 0, %s136
    %s153 = sphi 0, %s137
    %s157 = sphi 0, %s157
    %s159 = sphi 0, %s157
    %s160 = sphi 0, %s159
    %s174 = sphi 0, %s160
  $region4: #{fully_connected.4} parent=0 // loop_header_branch
    %16 = sbr.rel (%p14) target = $region8
  $region5: #{fully_connected.4} parent=0 // loop_body
    %s18 = ssub.s32 %s13, 1
    %s19 = ssub.s32 %s13, 2
    %s20 = sadd.s32 %s13, 1
    %s21 = ssub.s32 %s13, %s20
    %p22 = scmp.eq.s32.totalorder %s21, 0
    %s24 = sadd.s32 %s23, 1
    %s25 = scalar_select %p22, %s23, %s24
    %p28 = pneg %p22
    %p29 = scmp.eq.s32.totalorder %s13, 1
    %p30 = por %p28, %p29
    %p31 = scmp.ne.s32.totalorder %s23, %s26
    %p32 = scmp.eq.s32.totalorder %s13, 0
    %p33 = por %p31, %p32
    %p34 = scmp.ne.s32.totalorder %s23, %s26
    %p35 = scmp.eq.s32.totalorder %s18, 1
    %p36 = por %p34, %p35
    %p37 = scmp.ne.s32.totalorder %s26, %s27
    %p38 = scmp.eq.s32.totalorder %s18, 0
    %p39 = por %p37, %p38
    %p40 = scmp.ne.s32.totalorder %s26, %s27
    %p41 = scmp.eq.s32.totalorder %s19, 1
    %p42 = por %p40, %p41
    %p44 = scmp.ne.s32.totalorder %s27, %s43
    %p45 = scmp.eq.s32.totalorder %s19, 0
    %p46 = por %p44, %p45
    %s48 = sadd.s32 %s47, 1
    %p51 = scmp.eq.s32.totalorder %s13, 1
    %p52 = scmp.ne.s32.totalorder %s47, %s49
    %p53 = scmp.eq.s32.totalorder %s13, 0
    %p54 = por %p52, %p53
    %p55 = scmp.ne.s32.totalorder %s47, %s49
    %p56 = scmp.eq.s32.totalorder %s18, 1
    %p57 = por %p55, %p56
    %p58 = scmp.ne.s32.totalorder %s49, %s50
    %p59 = scmp.eq.s32.totalorder %s18, 0
    %p60 = por %p58, %p59
    %p61 = scmp.ne.s32.totalorder %s49, %s50
    %p62 = scmp.eq.s32.totalorder %s19, 1
    %p63 = por %p61, %p62
    %p65 = scmp.ne.s32.totalorder %s50, %s64
    %p66 = scmp.eq.s32.totalorder %s19, 0
    %p67 = por %p65, %p66
    %s69 = sadd.s32 %s68, 1
    %p72 = scmp.eq.s32.totalorder %s13, 1
    %p73 = scmp.ne.s32.totalorder %s68, %s70
    %p74 = scmp.eq.s32.totalorder %s13, 0
    %p75 = por %p73, %p74
    %p76 = scmp.ne.s32.totalorder %s68, %s70
    %p77 = scmp.eq.s32.totalorder %s18, 1
    %p78 = por %p76, %p77
    %p79 = scmp.ne.s32.totalorder %s70, %s71
    %p80 = scmp.eq.s32.totalorder %s18, 0
    %p81 = por %p79, %p80
    %p82 = scmp.ne.s32.totalorder %s70, %s71
    %p83 = scmp.eq.s32.totalorder %s19, 1
    %p84 = por %p82, %p83
    %p86 = scmp.ne.s32.totalorder %s71, %s85
    %p87 = scmp.eq.s32.totalorder %s19, 0
    %p88 = por %p86, %p87
    %s90 = sadd.s32 %s89, 1
    %p93 = scmp.eq.s32.totalorder %s13, 1
    %p94 = scmp.ne.s32.totalorder %s89, %s91
    %p95 = scmp.eq.s32.totalorder %s13, 0
    %p96 = por %p94, %p95
    %p97 = scmp.ne.s32.totalorder %s89, %s91
    %p98 = scmp.eq.s32.totalorder %s18, 1
    %p99 = por %p97, %p98
    %p100 = scmp.ne.s32.totalorder %s91, %s92
    %p101 = scmp.eq.s32.totalorder %s18, 0
    %p102 = por %p100, %p101
    %p103 = scmp.ne.s32.totalorder %s91, %s92
    %p104 = scmp.eq.s32.totalorder %s19, 1
    %p105 = por %p103, %p104
    %p107 = scmp.ne.s32.totalorder %s92, %s106
    %p108 = scmp.eq.s32.totalorder %s19, 0
    %p109 = por %p107, %p108
    %s111 = sadd.s32 %s110, 1
    %p114 = scmp.eq.s32.totalorder %s13, 1
    %p115 = scmp.ne.s32.totalorder %s110, %s112
    %p116 = scmp.eq.s32.totalorder %s13, 0
    %p117 = por %p115, %p116
    %p118 = scmp.ne.s32.totalorder %s110, %s112
    %p119 = scmp.eq.s32.totalorder %s18, 1
    %p120 = por %p118, %p119
    %p121 = scmp.ne.s32.totalorder %s112, %s113
    %p122 = scmp.eq.s32.totalorder %s18, 0
    %p123 = por %p121, %p122
    %p124 = scmp.ne.s32.totalorder %s112, %s113
    %p125 = scmp.eq.s32.totalorder %s19, 1
    %p126 = por %p124, %p125
    %p128 = scmp.ne.s32.totalorder %s113, %s127
    %p129 = scmp.eq.s32.totalorder %s19, 0
    %p130 = por %p128, %p129
    %s131 = ssub.s32 %s13, %s20
    %p132 = scmp.eq.s32.totalorder %s131, 0
    %s134 = sadd.s32 %s133, 1
    %s135 = scalar_select %p132, %s133, %s134
    %p138 = pneg %p132
    %p139 = scmp.eq.s32.totalorder %s13, 1
    %p140 = por %p138, %p139
    %p141 = scmp.ne.s32.totalorder %s133, %s136
    %p142 = scmp.eq.s32.totalorder %s13, 0
    %p143 = por %p141, %p142
    %p144 = scmp.ne.s32.totalorder %s133, %s136
    %p145 = scmp.eq.s32.totalorder %s18, 1
    %p146 = por %p144, %p145
    %p147 = scmp.ne.s32.totalorder %s136, %s137
    %p148 = scmp.eq.s32.totalorder %s18, 0
    %p149 = por %p147, %p148
    %p150 = scmp.ne.s32.totalorder %s136, %s137
    %p151 = scmp.eq.s32.totalorder %s19, 1
    %p152 = por %p150, %p151
    %p154 = scmp.ne.s32.totalorder %s137, %s153
    %p155 = scmp.eq.s32.totalorder %s19, 0
    %p156 = por %p154, %p155
    %s158 = sadd.s32 %s157, 1
    %p161 = scmp.eq.s32.totalorder %s13, 1
    %p162 = scmp.ne.s32.totalorder %s157, %s159
    %p163 = scmp.eq.s32.totalorder %s13, 0
    %p164 = por %p162, %p163
    %p165 = scmp.ne.s32.totalorder %s157, %s159
    %p166 = scmp.eq.s32.totalorder %s18, 1
    %p167 = por %p165, %p166
    %p168 = scmp.ne.s32.totalorder %s159, %s160
    %p169 = scmp.eq.s32.totalorder %s18, 0
    %p170 = por %p168, %p169
    %p171 = scmp.ne.s32.totalorder %s159, %s160
    %p172 = scmp.eq.s32.totalorder %s19, 1
    %p173 = por %p171, %p172
    %p175 = scmp.ne.s32.totalorder %s160, %s174
    %p176 = scmp.eq.s32.totalorder %s19, 0
    %p177 = por %p175, %p176
    %p178 = scmp.le.s32.totalorder 1, %s13
    %p179 = scmp.lt.s32.totalorder %s13, 3
    %p180 = pnand %p178, %p179
    %p181 = pneg %p180
    // Predicated region
    $region9: #{fully_connected.4} parent=5 // pred_check
      _
    $region10: #{fully_connected.4} parent=5 // pred_check_branch
      %183 = sbr.rel (%p180) target = $region12
    $region11: #{fully_connected.4} parent=5 // pred_region
      %s184 = ssub.s32 %s13, 1
      // Predicated region
      $region13: #{fully_connected.4} parent=11 // pred_check
        %p185 = pneg %p60
      $region14: #{fully_connected.4} parent=11 // pred_check_branch
        %187 = sbr.rel (%p185) target = $region16
      $region15: #{fully_connected.4} parent=11 // pred_region
        _
      $region16: #{fully_connected.4} parent=11 // pred_fallthru
        _
      // Predicated region
      $region17: #{fully_connected.4} parent=11 // pred_check
        %p188 = pneg %p81
      $region18: #{fully_connected.4} parent=11 // pred_check_branch
        %190 = sbr.rel (%p188) target = $region20
      $region19: #{fully_connected.4} parent=11 // pred_region
        _
      $region20: #{fully_connected.4} parent=11 // pred_fallthru
        _
      // Predicated region
      $region21: #{fully_connected.4} parent=11 // pred_check
        %p191 = pneg %p102
      $region22: #{fully_connected.4} parent=11 // pred_check_branch
        %193 = sbr.rel (%p191) target = $region24
      $region23: #{fully_connected.4} parent=11 // pred_region
        _
      $region24: #{fully_connected.4} parent=11 // pred_fallthru
        _
      // Predicated region
      $region25: #{fully_connected.4} parent=11 // pred_check
        %p194 = pneg %p123
      $region26: #{fully_connected.4} parent=11 // pred_check_branch
        %196 = sbr.rel (%p194) target = $region28
      $region27: #{fully_connected.4} parent=11 // pred_region
        _
      $region28: #{fully_connected.4} parent=11 // pred_fallthru
        _
    $region12: #{fully_connected.4} parent=5 // pred_fallthru
      _
    %p197 = scmp.lt.s32.totalorder %s13, 2
    // Predicated region
    $region29: #{fully_connected.4} parent=5 // pred_check
      %p198 = pneg %p197
    $region30: #{fully_connected.4} parent=5 // pred_check_branch
      %200 = sbr.rel (%p198) target = $region32
    $region31: #{fully_connected.4} parent=5 // pred_region
      // Predicated region
      $region33: #{fully_connected.4} parent=31 // pred_check
        %p201 = pneg %p33
      $region34: #{fully_connected.4} parent=31 // pred_check_branch
        %203 = sbr.rel (%p201) target = $region36
      $region35: #{fully_connected.4} parent=31 // pred_region
        %s204 = smul.u32 16, %s13
        %p205 = scmp.lt.s32.totalorder %s204, 31
        %s206 = scalar_select %p205, %s204, 31
        %s207 = smul.addr %s206, 8
        %s208 = scalar_lea.vmem %s0, %s207
        %s209 = smul.u32 16, %s13
      $region36: #{fully_connected.4} parent=31 // pred_fallthru
        _
    $region32: #{fully_connected.4} parent=5 // pred_fallthru
      _
    %p210 = scmp.le.s32.totalorder 1, %s13
    %p211 = scmp.lt.s32.totalorder %s13, 3
    %p212 = pnand %p210, %p211
    %p213 = pneg %p212
    // Predicated region
    $region37: #{fully_connected.4} parent=5 // pred_check
      _
    $region38: #{fully_connected.4} parent=5 // pred_check_branch
      %215 = sbr.rel (%p212) target = $region40
    $region39: #{fully_connected.4} parent=5 // pred_region
      %s216 = ssub.s32 %s13, 1
      %s217 = smul.u32 16, %s18
      %p218 = scmp.lt.s32.totalorder %s217, 31
      %s219 = scalar_select %p218, %s217, 31
      %s220 = smul.addr %s219, 8
      %s221 = scalar_lea.vmem %s0, %s220
      %p222 = pneg %p39
      %p223 = pneg %p36
      %p224 = pneg %p60
      %p225 = pneg %p57
      %p226 = pneg %p81
      %p227 = pneg %p78
      %p228 = pneg %p102
      %p229 = pneg %p99
      %p230 = pneg %p123
      %p231 = pneg %p120
      %p232 = pneg %p149
      %p233 = pneg %p146
      %s234 = smul.u32 16, %s18
      %p235 = scmp.lt.s32.totalorder %s234, 31
      %s236 = scalar_select %p235, %s234, 31
      %s237 = smul.addr %s236, 8
      %s238 = scalar_lea.vmem %s5, %s237
      %p239 = pneg %p170
      %p240 = pneg %p167
      %s241 = smul.u32 16, %s18
      %p242 = scmp.lt.s32.totalorder %s241, 31
      %s243 = scalar_select %p242, %s241, 31
      %s244 = smul.addr %s243, 8
      %s245 = scalar_lea.vmem %s0, %s244
      %s246 = smul.u32 16, %s18
      %s247 = smul.u32 16, %s18
      %p248 = scmp.lt.s32.totalorder %s247, 31
      %s249 = scalar_select %p248, %s247, 31
      %s250 = smul.addr %s249, 8
      %s251 = scalar_lea.vmem %s5, %s250
      %s252 = smul.u32 16, %s18
      %p253 = scmp.eq.s32.totalorder %s18, 0
      // Predicated region
      $region41: #{fully_connected.4} parent=39 // pred_check
        %p254 = pneg %p253
      $region42: #{fully_connected.4} parent=39 // pred_check_branch
        %256 = sbr.rel (%p254) target = $region44
      $region43: #{fully_connected.4} parent=39 // pred_region
        %257 = vst [vmem:[%s6] sm:$0x3] 0.0
      $region44: #{fully_connected.4} parent=39 // pred_fallthru
        _
      %v258 = vld [vmem:[%s245] sm:$0xff]
      %v259 = vld [vmem:[%s245 + $0x8] sm:$0xff]
      %v260 = vld [vmem:[%s245 + $0x10] sm:$0xff]
      %v261 = vld [vmem:[%s245 + $0x18] sm:$0xff]
      %v262 = vld [vmem:[%s245 + $0x20] sm:$0xff]
      %v263 = vld [vmem:[%s245 + $0x28] sm:$0xff]
      %v264 = vld [vmem:[%s245 + $0x30] sm:$0xff]
      %v265 = vld [vmem:[%s245 + $0x38] sm:$0xff]
      %v266 = vld [vmem:[%s245 + $0x40] sm:$0xff]
      %v267 = vld [vmem:[%s245 + $0x48] sm:$0xff]
      %v268 = vld [vmem:[%s245 + $0x50] sm:$0xff]
      %v269 = vld [vmem:[%s245 + $0x58] sm:$0xff]
      %v270 = vld [vmem:[%s245 + $0x60] sm:$0xff]
      %v271 = vld [vmem:[%s245 + $0x68] sm:$0xff]
      %v272 = vld [vmem:[%s245 + $0x70] sm:$0xff]
      %v273 = vld [vmem:[%s245 + $0x78] sm:$0xff]
      %v274 = vld [vmem:[%s1] sm:$0x1]
      %v275 = vld [vmem:[%s2] sm:$0x1]
      %277 = vset.pattern.permute.xlu0 0
      %278 = vperm.xlu0 %277, %v258
      %v279 = vpop.permute.xlu0 %278
      %282 = vset.pattern.permute.xlu0 0
      %283 = vperm.xlu0 %282, %v259
      %v284 = vpop.permute.xlu0 %283
      %287 = vset.pattern.permute.xlu0 0
      %288 = vperm.xlu0 %287, %v260
      %v289 = vpop.permute.xlu0 %288
      %292 = vset.pattern.permute.xlu0 0
      %293 = vperm.xlu0 %292, %v261
      %v294 = vpop.permute.xlu0 %293
      %297 = vset.pattern.permute.xlu0 0
      %298 = vperm.xlu0 %297, %v262
      %v299 = vpop.permute.xlu0 %298
      %302 = vset.pattern.permute.xlu0 0
      %303 = vperm.xlu0 %302, %v263
      %v304 = vpop.permute.xlu0 %303
      %307 = vset.pattern.permute.xlu0 0
      %308 = vperm.xlu0 %307, %v264
      %v309 = vpop.permute.xlu0 %308
      %312 = vset.pattern.permute.xlu0 0
      %313 = vperm.xlu0 %312, %v265
      %v314 = vpop.permute.xlu0 %313
      %317 = vset.pattern.permute.xlu0 0
      %318 = vperm.xlu0 %317, %v266
      %v319 = vpop.permute.xlu0 %318
      %322 = vset.pattern.permute.xlu0 0
      %323 = vperm.xlu0 %322, %v267
      %v324 = vpop.permute.xlu0 %323
      %327 = vset.pattern.permute.xlu0 0
      %328 = vperm.xlu0 %327, %v268
      %v329 = vpop.permute.xlu0 %328
      %332 = vset.pattern.permute.xlu0 0
      %333 = vperm.xlu0 %332, %v269
      %v334 = vpop.permute.xlu0 %333
      %337 = vset.pattern.permute.xlu0 0
      %338 = vperm.xlu0 %337, %v270
      %v339 = vpop.permute.xlu0 %338
      %342 = vset.pattern.permute.xlu0 0
      %343 = vperm.xlu0 %342, %v271
      %v344 = vpop.permute.xlu0 %343
      %347 = vset.pattern.permute.xlu0 0
      %348 = vperm.xlu0 %347, %v272
      %v349 = vpop.permute.xlu0 %348
      %352 = vset.pattern.permute.xlu0 0
      %353 = vperm.xlu0 %352, %v273
      %v354 = vpop.permute.xlu0 %353
      %v357 = vlaneseq
      %v358 = vshrl.u32 %v357, 7
      %v359 = vsub.s32 0, %v358
      %v360 = vrot.slane %v274, %v359
      %v362 = vmul.f32 %v279, %v360
      %v363 = vmul.f32 %v284, %v360
      %v364 = vmul.f32 %v289, %v360
      %v365 = vmul.f32 %v294, %v360
      %v366 = vmul.f32 %v299, %v360
      %v367 = vmul.f32 %v304, %v360
      %v368 = vmul.f32 %v309, %v360
      %v369 = vmul.f32 %v314, %v360
      %v370 = vmul.f32 %v319, %v360
      %v371 = vmul.f32 %v324, %v360
      %v372 = vmul.f32 %v329, %v360
      %v373 = vmul.f32 %v334, %v360
      %v374 = vmul.f32 %v339, %v360
      %v375 = vmul.f32 %v344, %v360
      %v376 = vmul.f32 %v349, %v360
      %v377 = vmul.f32 %v354, %v360
      %v379 = vlaneseq
      %v380 = vshrl.u32 %v379, 7
      %v381 = vsub.s32 0, %v380
      %v382 = vrot.slane %v275, %v381
      %v384 = vadd.f32 %v362, %v382
      %v385 = vadd.f32 %v363, %v382
      %v386 = vadd.f32 %v364, %v382
      %v387 = vadd.f32 %v365, %v382
      %v388 = vadd.f32 %v366, %v382
      %v389 = vadd.f32 %v367, %v382
      %v390 = vadd.f32 %v368, %v382
      %v391 = vadd.f32 %v369, %v382
      %v392 = vadd.f32 %v370, %v382
      %v393 = vadd.f32 %v371, %v382
      %v394 = vadd.f32 %v372, %v382
      %v395 = vadd.f32 %v373, %v382
      %v396 = vadd.f32 %v374, %v382
      %v397 = vadd.f32 %v375, %v382
      %v398 = vadd.f32 %v376, %v382
      %v399 = vadd.f32 %v377, %v382
      %v400 = vmax.f32 %v384, 0.0
      %v401 = vmax.f32 %v385, 0.0
      %v402 = vmax.f32 %v386, 0.0
      %v403 = vmax.f32 %v387, 0.0
      %v404 = vmax.f32 %v388, 0.0
      %v405 = vmax.f32 %v389, 0.0
      %v406 = vmax.f32 %v390, 0.0
      %v407 = vmax.f32 %v391, 0.0
      %v408 = vmax.f32 %v392, 0.0
      %v409 = vmax.f32 %v393, 0.0
      %v410 = vmax.f32 %v394, 0.0
      %v411 = vmax.f32 %v395, 0.0
      %v412 = vmax.f32 %v396, 0.0
      %v413 = vmax.f32 %v397, 0.0
      %v414 = vmax.f32 %v398, 0.0
      %v415 = vmax.f32 %v399, 0.0
      %416 = vst [vmem:[%s251] sm:$0xff] %v400
      %417 = vst [vmem:[%s251 + $0x8] sm:$0xff] %v401
      %418 = vst [vmem:[%s251 + $0x10] sm:$0xff] %v402
      %419 = vst [vmem:[%s251 + $0x18] sm:$0xff] %v403
      %420 = vst [vmem:[%s251 + $0x20] sm:$0xff] %v404
      %421 = vst [vmem:[%s251 + $0x28] sm:$0xff] %v405
      %422 = vst [vmem:[%s251 + $0x30] sm:$0xff] %v406
      %423 = vst [vmem:[%s251 + $0x38] sm:$0xff] %v407
      %424 = vst [vmem:[%s251 + $0x40] sm:$0xff] %v408
      %425 = vst [vmem:[%s251 + $0x48] sm:$0xff] %v409
      %426 = vst [vmem:[%s251 + $0x50] sm:$0xff] %v410
      %427 = vst [vmem:[%s251 + $0x58] sm:$0xff] %v411
      %428 = vst [vmem:[%s251 + $0x60] sm:$0xff] %v412
      %429 = vst [vmem:[%s251 + $0x68] sm:$0xff] %v413
      %430 = vst [vmem:[%s251 + $0x70] sm:$0xff] %v414
      %431 = vst [vmem:[%s251 + $0x78] sm:$0xff] %v415
      %v432 = vld [vmem:[%s3] sm:$0xff]
      %v433 = vld [vmem:[%s3 + $0x8] sm:$0xff]
      %v434 = vld [vmem:[%s3 + $0x10] sm:$0xff]
      %v435 = vld [vmem:[%s3 + $0x18] sm:$0xff]
      %v436 = vld [vmem:[%s3 + $0x20] sm:$0xff]
      %v437 = vld [vmem:[%s3 + $0x28] sm:$0xff]
      %v438 = vld [vmem:[%s3 + $0x30] sm:$0xff]
      %v439 = vld [vmem:[%s3 + $0x38] sm:$0xff]
      %v440 = vld [vmem:[%s3 + $0x40] sm:$0xff]
      %v441 = vld [vmem:[%s3 + $0x48] sm:$0xff]
      %v442 = vld [vmem:[%s3 + $0x50] sm:$0xff]
      %v443 = vld [vmem:[%s3 + $0x58] sm:$0xff]
      %v444 = vld [vmem:[%s3 + $0x60] sm:$0xff]
      %v445 = vld [vmem:[%s3 + $0x68] sm:$0xff]
      %v446 = vld [vmem:[%s3 + $0x70] sm:$0xff]
      %v447 = vld [vmem:[%s3 + $0x78] sm:$0xff]
      %v448 = vld [vmem:[%s4] sm:$0x1]
      %v450 = vlaneseq
      %v451 = vshrl.u32 %v450, 7
      %v452 = vsub.s32 0, %v451
      %v453 = vrot.slane %v448, %v452
      %455 = vmatprep.subr.mxu0 0.0
      %456 = vmatpush1.msra.mxu0 %v432
      %457 = vmatprep.subr.mxu0 0.0
      %458 = vmatpush1.msra.mxu0 %v433
      %459 = vmatprep.subr.mxu0 0.0
      %460 = vmatpush1.msra.mxu0 %v434
      %461 = vmatprep.subr.mxu0 0.0
      %462 = vmatpush1.msra.mxu0 %v435
      %463 = vmatprep.subr.mxu0 0.0
      %464 = vmatpush1.msra.mxu0 %v436
      %465 = vmatprep.subr.mxu0 0.0
      %466 = vmatpush1.msra.mxu0 %v437
      %467 = vmatprep.subr.mxu0 0.0
      %468 = vmatpush1.msra.mxu0 %v438
      %469 = vmatprep.subr.mxu0 0.0
      %470 = vmatpush1.msra.mxu0 %v439
      %471 = vmatprep.subr.mxu0 0.0
      %472 = vmatpush1.msra.mxu0 %v440
      %473 = vmatprep.subr.mxu0 0.0
      %474 = vmatpush1.msra.mxu0 %v441
      %475 = vmatprep.subr.mxu0 0.0
      %476 = vmatpush1.msra.mxu0 %v442
      %477 = vmatprep.subr.mxu0 0.0
      %478 = vmatpush1.msra.mxu0 %v443
      %479 = vmatprep.subr.mxu0 0.0
      %480 = vmatpush1.msra.mxu0 %v444
      %481 = vmatprep.subr.mxu0 0.0
      %482 = vmatpush1.msra.mxu0 %v445
      %483 = vmatprep.subr.mxu0 0.0
      %484 = vmatpush1.msra.mxu0 %v446
      %485 = vmatprep.subr.mxu0 0.0
      %486 = vmatpush1.msra.mxu0 %v447
      %487 = vmatprep.subr.mxu0 0.0
      %488 = vmatpush1.msra.mxu0 0.0
      %489 = vmatprep.subr.mxu0 0.0
      %490 = vmatpush1.msra.mxu0 0.0
      %491 = vmatprep.subr.mxu0 0.0
      %492 = vmatpush1.msra.mxu0 0.0
      %493 = vmatprep.subr.mxu0 0.0
      %494 = vmatpush1.msra.mxu0 0.0
      %495 = vmatprep.subr.mxu0 0.0
      %496 = vmatpush1.msra.mxu0 0.0
      %497 = vmatprep.subr.mxu0 0.0
      %498 = vmatpush1.msra.mxu0 0.0
      %499 = vmatprep.subr.mxu0 0.0
      %500 = vmatpush1.msra.mxu0 0.0
      %501 = vmatprep.subr.mxu0 0.0
      %502 = vmatpush1.msra.mxu0 0.0
      %503 = vmatprep.subr.mxu0 0.0
      %504 = vmatpush1.msra.mxu0 0.0
      %505 = vmatprep.subr.mxu0 0.0
      %506 = vmatpush1.msra.mxu0 0.0
      %507 = vmatprep.subr.mxu0 0.0
      %508 = vmatpush1.msra.mxu0 0.0
      %509 = vmatprep.subr.mxu0 0.0
      %510 = vmatpush1.msra.mxu0 0.0
      %511 = vmatprep.subr.mxu0 0.0
      %512 = vmatpush1.msra.mxu0 0.0
      %513 = vmatprep.subr.mxu0 0.0
      %514 = vmatpush1.msra.mxu0 0.0
      %515 = vmatprep.subr.mxu0 0.0
      %516 = vmatpush1.msra.mxu0 0.0
      %517 = vmatprep.subr.mxu0 0.0
      %518 = vmatpush1.msra.mxu0 0.0
      %519 = vmatprep.mubr.f32.mxu0 0.0
      %520 = vmatmul.mubr.f32.gmra.mrb[0].mxu0 %v400
      %v521 = vpop.f32.mrb[0].mxu0
      %v522 = vadd.f32 %v453, %v521
      %v523 = vpop.f32.mrb[0].mxu0
      %524 = vmatprep.mubr.f32.mxu0 0.0
      %525 = vmatmul.mubr.f32.gmra.mrb[0].mxu0 %v401
      %v526 = vpop.f32.mrb[0].mxu0
      %v527 = vadd.f32 %v453, %v526
      %v528 = vpop.f32.mrb[0].mxu0
      %529 = vmatprep.mubr.f32.mxu0 0.0
      %530 = vmatmul.mubr.f32.gmra.mrb[0].mxu0 %v402
      %v531 = vpop.f32.mrb[0].mxu0
      %v532 = vadd.f32 %v453, %v531
      %v533 = vpop.f32.mrb[0].mxu0
      %534 = vmatprep.mubr.f32.mxu0 0.0
      %535 = vmatmul.mubr.f32.gmra.mrb[0].mxu0 %v403
      %v536 = vpop.f32.mrb[0].mxu0
      %v537 = vadd.f32 %v453, %v536
      %v538 = vpop.f32.mrb[0].mxu0
      %539 = vmatprep.mubr.f32.mxu0 0.0
      %540 = vmatmul.mubr.f32.gmra.mrb[0].mxu0 %v404
      %v541 = vpop.f32.mrb[0].mxu0
      %v542 = vadd.f32 %v453, %v541
      %v543 = vpop.f32.mrb[0].mxu0
      %544 = vmatprep.mubr.f32.mxu0 0.0
      %545 = vmatmul.mubr.f32.gmra.mrb[0].mxu0 %v405
      %v546 = vpop.f32.mrb[0].mxu0
      %v547 = vadd.f32 %v453, %v546
      %v548 = vpop.f32.mrb[0].mxu0
      %549 = vmatprep.mubr.f32.mxu0 0.0
      %550 = vmatmul.mubr.f32.gmra.mrb[0].mxu0 %v406
      %v551 = vpop.f32.mrb[0].mxu0
      %v552 = vadd.f32 %v453, %v551
      %v553 = vpop.f32.mrb[0].mxu0
      %554 = vmatprep.mubr.f32.mxu0 0.0
      %555 = vmatmul.mubr.f32.gmra.mrb[0].mxu0 %v407
      %v556 = vpop.f32.mrb[0].mxu0
      %v557 = vadd.f32 %v453, %v556
      %v558 = vpop.f32.mrb[0].mxu0
      %559 = vmatprep.mubr.f32.mxu0 0.0
      %560 = vmatmul.mubr.f32.gmra.mrb[0].mxu0 %v408
      %v561 = vpop.f32.mrb[0].mxu0
      %v562 = vadd.f32 %v453, %v561
      %v563 = vpop.f32.mrb[0].mxu0
      %564 = vmatprep.mubr.f32.mxu0 0.0
      %565 = vmatmul.mubr.f32.gmra.mrb[0].mxu0 %v409
      %v566 = vpop.f32.mrb[0].mxu0
      %v567 = vadd.f32 %v453, %v566
      %v568 = vpop.f32.mrb[0].mxu0
      %569 = vmatprep.mubr.f32.mxu0 0.0
      %570 = vmatmul.mubr.f32.gmra.mrb[0].mxu0 %v410
      %v571 = vpop.f32.mrb[0].mxu0
      %v572 = vadd.f32 %v453, %v571
      %v573 = vpop.f32.mrb[0].mxu0
      %574 = vmatprep.mubr.f32.mxu0 0.0
      %575 = vmatmul.mubr.f32.gmra.mrb[0].mxu0 %v411
      %v576 = vpop.f32.mrb[0].mxu0
      %v577 = vadd.f32 %v453, %v576
      %v578 = vpop.f32.mrb[0].mxu0
      %579 = vmatprep.mubr.f32.mxu0 0.0
      %580 = vmatmul.mubr.f32.gmra.mrb[0].mxu0 %v412
      %v581 = vpop.f32.mrb[0].mxu0
      %v582 = vadd.f32 %v453, %v581
      %v583 = vpop.f32.mrb[0].mxu0
      %584 = vmatprep.mubr.f32.mxu0 0.0
      %585 = vmatmul.mubr.f32.gmra.mrb[0].mxu0 %v413
      %v586 = vpop.f32.mrb[0].mxu0
      %v587 = vadd.f32 %v453, %v586
      %v588 = vpop.f32.mrb[0].mxu0
      %589 = vmatprep.mubr.f32.mxu0 0.0
      %590 = vmatmul.mubr.f32.gmra.mrb[0].mxu0 %v414
      %v591 = vpop.f32.mrb[0].mxu0
      %v592 = vadd.f32 %v453, %v591
      %v593 = vpop.f32.mrb[0].mxu0
      %594 = vmatprep.mubr.f32.mxu0 0.0
      %595 = vmatmul.mubr.f32.gmra.mrb[0].mxu0 %v415
      %v596 = vpop.f32.mrb[0].mxu0
      %v597 = vadd.f32 %v453, %v596
      %v598 = vpop.f32.mrb[0].mxu0
      %599 = vdwg.mxu0
      %v600 = vld [vmem:[%s6] sm:$0x3]
      %v601 = vadd.f32 %v522, %v527
      %v602 = vadd.f32 %v601, %v532
      %v603 = vadd.f32 %v602, %v537
      %v604 = vadd.f32 %v603, %v542
      %v605 = vadd.f32 %v604, %v547
      %v606 = vadd.f32 %v605, %v552
      %v607 = vadd.f32 %v606, %v557
      %v608 = vadd.f32 %v607, %v562
      %v609 = vadd.f32 %v608, %v567
      %v610 = vadd.f32 %v609, %v572
      %v611 = vadd.f32 %v610, %v577
      %v612 = vadd.f32 %v611, %v582
      %v613 = vadd.f32 %v612, %v587
      %v614 = vadd.f32 %v613, %v592
      %v615 = vadd.f32 %v614, %v597
      %v616 = vrot.slane %v615, 4
      %v617 = vadd.f32 %v615, %v616
      %v618 = vrot.slane %v617, 2
      %v619 = vadd.f32 %v617, %v618
      %v620 = vrot.slane %v619, 1
      %v621 = vadd.f32 %v619, %v620
      %v622 = vmul.f32 %v522, %v522
      %v623 = vmul.f32 %v527, %v527
      %v624 = vmul.f32 %v532, %v532
      %v625 = vmul.f32 %v537, %v537
      %v626 = vmul.f32 %v542, %v542
      %v627 = vmul.f32 %v547, %v547
      %v628 = vmul.f32 %v552, %v552
      %v629 = vmul.f32 %v557, %v557
      %v630 = vmul.f32 %v562, %v562
      %v631 = vmul.f32 %v567, %v567
      %v632 = vmul.f32 %v572, %v572
      %v633 = vmul.f32 %v577, %v577
      %v634 = vmul.f32 %v582, %v582
      %v635 = vmul.f32 %v587, %v587
      %v636 = vmul.f32 %v592, %v592
      %v637 = vmul.f32 %v597, %v597
      %v638 = vadd.f32 %v622, %v623
      %v639 = vadd.f32 %v638, %v624
      %v640 = vadd.f32 %v639, %v625
      %v641 = vadd.f32 %v640, %v626
      %v642 = vadd.f32 %v641, %v627
      %v643 = vadd.f32 %v642, %v628
      %v644 = vadd.f32 %v643, %v629
      %v645 = vadd.f32 %v644, %v630
      %v646 = vadd.f32 %v645, %v631
      %v647 = vadd.f32 %v646, %v632
      %v648 = vadd.f32 %v647, %v633
      %v649 = vadd.f32 %v648, %v634
      %v650 = vadd.f32 %v649, %v635
      %v651 = vadd.f32 %v650, %v636
      %v652 = vadd.f32 %v651, %v637
      %v653 = vrot.slane %v652, 4
      %v654 = vadd.f32 %v652, %v653
      %v655 = vrot.slane %v654, 2
      %v656 = vadd.f32 %v654, %v655
      %v657 = vrot.slane %v656, 1
      %v658 = vadd.f32 %v656, %v657
      %vm659 = vcmask 1040384
      %v660 = vsel %vm659, %v621, %v658
      %v661 = vadd.f32 %v600, %v660
      %662 = vst [vmem:[%s6] sm:$0x3] %v661
      %s663 = smul.u32 16, %s18
      %p664 = scmp.lt.s32.totalorder %s663, 31
      %s665 = scalar_select %p664, %s663, 31
      %s666 = smul.addr %s665, 8
      %s667 = scalar_lea.vmem %s5, %s666
      // Predicated region
      $region45: #{fully_connected.4} parent=39 // pred_check
        %p668 = pneg %p146
      $region46: #{fully_connected.4} parent=39 // pred_check_branch
        %670 = sbr.rel (%p668) target = $region48
      $region47: #{fully_connected.4} parent=39 // pred_region
        %s671 = smul.u32 16, %s18
      $region48: #{fully_connected.4} parent=39 // pred_fallthru
        _
      // Predicated region
      $region49: #{fully_connected.4} parent=39 // pred_check
        %p672 = pneg %p167
      $region50: #{fully_connected.4} parent=39 // pred_check_branch
        %674 = sbr.rel (%p672) target = $region52
      $region51: #{fully_connected.4} parent=39 // pred_region
        _
      $region52: #{fully_connected.4} parent=39 // pred_fallthru
        _
      // Predicated region
      $region53: #{fully_connected.4} parent=39 // pred_check
        %p675 = pneg %p167
      $region54: #{fully_connected.4} parent=39 // pred_check_branch
        %677 = sbr.rel (%p675) target = $region56
      $region55: #{fully_connected.4} parent=39 // pred_region
        _
      $region56: #{fully_connected.4} parent=39 // pred_fallthru
        _
    $region40: #{fully_connected.4} parent=5 // pred_fallthru
      _
    %p678 = scmp.le.s32.totalorder 2, %s13
    // Predicated region
    $region57: #{fully_connected.4} parent=5 // pred_check
      %p679 = pneg %p678
    $region58: #{fully_connected.4} parent=5 // pred_check_branch
      %681 = sbr.rel (%p679) target = $region60
    $region59: #{fully_connected.4} parent=5 // pred_region
      %s682 = ssub.s32 %s13, 2
      // Predicated region
      $region61: #{fully_connected.4} parent=59 // pred_check
        %p683 = pneg %p152
      $region62: #{fully_connected.4} parent=59 // pred_check_branch
        %685 = sbr.rel (%p683) target = $region64
      $region63: #{fully_connected.4} parent=59 // pred_region
        %s686 = smul.u32 16, %s19
        %p687 = scmp.lt.s32.totalorder %s686, 31
        %s688 = scalar_select %p687, %s686, 31
        %s689 = smul.addr %s688, 8
        %s690 = scalar_lea.vmem %s5, %s689
      $region64: #{fully_connected.4} parent=59 // pred_fallthru
        _
    $region60: #{fully_connected.4} parent=5 // pred_fallthru
      _
  $region6: #{fully_connected.4} parent=0 // loop_footer
    %s17 = sadd.s32 1, %s13
  $region7: #{fully_connected.4} parent=0 // loop_footer_branch
    %12 = sbr.rel target = $region3
  $region8: #{fully_connected.4} parent=0 // loop_exit
    _

</llo_original>
